<compile_context>
chip_gen: v5e
topology: v5e:2x2
jax: 0.10.0
libtpu: 0.0.40
codegen_flags: <defaults>
</compile_context>

<pallas_src>
import jax
import jax.numpy as jnp
from jax import lax
from jax.experimental import pallas as pl
from jax.experimental.pallas import tpu as pltpu


def _policy_kernel(x_ref, g_ref, w1_ref, b1_ref, w2_ref, b2_ref, w3_ref,
                   b3_ref, out_ref):
    # fc1 + relu   (bf16 MXU inputs, f32 accumulation)
    h1 = jnp.dot(x_ref[...], w1_ref[...],
                 preferred_element_type=jnp.float32) + b1_ref[...]
    h1 = jnp.maximum(h1, 0.0)
    # fc2 + relu
    h2 = jnp.dot(h1.astype(jnp.bfloat16), w2_ref[...],
                 preferred_element_type=jnp.float32) + b2_ref[...]
    h2 = jnp.maximum(h2, 0.0)
    # fc3 -> logits
    logits = jnp.dot(h2.astype(jnp.bfloat16), w3_ref[...],
                     preferred_element_type=jnp.float32) + b3_ref[...]

    tb, nu = logits.shape

    # log-softmax with a single exp pass (matches Categorical normalization).
    m = jnp.max(logits, axis=-1, keepdims=True)
    shifted = logits - m
    e = jnp.exp(shifted)
    s = jnp.sum(e, axis=-1, keepdims=True)
    log_s = jnp.log(s)
    logp_all = shifted - log_s                     # log p(u | x)

    # entropy = -sum(p * log p) = log(s) - sum(e * shifted)/s ; clamp >= 0.
    ent = jnp.maximum(
        log_s - jnp.sum(e * shifted, axis=-1, keepdims=True) / s, 0.0)

    # Gumbel-max sampling: argmax(logits + g).  Exact ties -> lowest index.
    z = logits + g_ref[...]
    zmax = jnp.max(z, axis=-1, keepdims=True)
    idx = lax.broadcasted_iota(jnp.int32, (tb, nu), 1)
    action = jnp.min(jnp.where(z == zmax, idx, jnp.int32(nu)), axis=-1,
                     keepdims=True)

    # log_prob(action): masked gather; clamp <= 0 for f32 rounding safety.
    logp_act = jnp.minimum(
        jnp.sum(jnp.where(idx == action, logp_all, 0.0), axis=-1,
                keepdims=True), 0.0)

    # Pack into a (3, tb) lane-dense slab: one tiny XLU transpose, dense store.
    packed = jnp.concatenate(
        [action.astype(jnp.float32), logp_act, ent], axis=-1)     # (tb, 3)
    out_ref[...] = packed.T                                       # (3, tb)


def _round_up(n, m):
    return ((n + m - 1) // m) * m


@jax.jit
def policy_net_forward(x, params, key):
    """Runs PolicyNet.forward on a batch. Returns (action, log_prob, entropy)."""
    w1, b1, w2, b2, w3, b3 = params
    B, nvec_s = x.shape
    nu = w3.shape[1]

    # Batch tile: bigger tiles for big batches (amortize ~0.35us/grid-step),
    # while keeping >= 2 grid steps for B >= 256 so both v7x TensorCores work.
    if B >= 1024:
        tb = 512
    elif B >= 512:
        tb = 256
    else:
        tb = 128
    Bp = _round_up(B, tb)
    grid = (Bp // tb,)

    # bf16 input stream (the kernel feeds it straight to the MXU); zero-pad the
    # batch to the tile multiple -- padded rows are computed then discarded.
    # TODO(synk): in a real RL loop, produce/store x as bf16 upstream so this
    # cast does not become a separate XLA op.
    xb = x.astype(jnp.bfloat16)
    if Bp != B:
        xb = jnp.pad(xb, ((0, Bp - B), (0, 0)))

    # Gumbel noise for Categorical sampling: argmax(logits + g) ~ Cat(logits).
    gumbel = jax.random.gumbel(key, (Bp, nu), jnp.float32)

    def replicated(shape):
        return pl.BlockSpec(shape, lambda i: (0, 0))

    flops = 2 * Bp * (nvec_s * 128 + 128 * 64 + 64 * nu)
    transcendentals = Bp * (nu + 1)                 # exp over logits + log/row
    bytes_accessed = (xb.size * 2 + gumbel.size * 4
                      + (w1.size + w2.size + w3.size) * 2
                      + (b1.size + b2.size + b3.size) * 4
                      + 3 * Bp * 4)

    out = pl.pallas_call(
        _policy_kernel,
        out_shape=jax.ShapeDtypeStruct((3, Bp), jnp.float32),
        grid_spec=pltpu.PrefetchScalarGridSpec(
            num_scalar_prefetch=0,
            grid=grid,
            in_specs=[
                pl.BlockSpec((tb, nvec_s), lambda i: (i, 0)),
                pl.BlockSpec((tb, nu), lambda i: (i, 0)),
                replicated(w1.shape), replicated(b1.shape),
                replicated(w2.shape), replicated(b2.shape),
                replicated(w3.shape), replicated(b3.shape),
            ],
            out_specs=pl.BlockSpec((3, tb), lambda i: (0, i)),
        ),
        compiler_params=pltpu.CompilerParams(
            dimension_semantics=("parallel",)),
        cost_estimate=pl.CostEstimate(
            flops=flops,
            transcendentals=transcendentals,
            bytes_accessed=bytes_accessed),
    )(xb, gumbel, w1, b1, w2, b2, w3, b3)

    action = out[0, :B].astype(jnp.int32)   # small ints: exact through f32
    log_prob = out[1, :B]
    entropy = out[2, :B]
    return action, log_prob, entropy


def init_params(key, nvec_s, nvec_u):
    """nn.Linear-style init; weights stored (in, out) as bf16 once (MXU dtype)."""
    ks = jax.random.split(key, 6)

    def lin(kw, kb, fan_in, fan_out):
        bound = fan_in ** -0.5
        w = jax.random.uniform(kw, (fan_in, fan_out), jnp.float32, -bound, bound)
        b = jax.random.uniform(kb, (1, fan_out), jnp.float32, -bound, bound)
        return w.astype(jnp.bfloat16), b

    w1, b1 = lin(ks[0], ks[1], nvec_s, 128)
    w2, b2 = lin(ks[2], ks[3], 128, 64)
    w3, b3 = lin(ks[4], ks[5], 64, nvec_u)
    return (w1, b1, w2, b2, w3, b3)


if __name__ == "__main__":
    nvec_s, nvec_u, batch = 32, 8, 200   # non-multiple of 128: exercises padding + 2-step grid

    key = jax.random.PRNGKey(0)
    k_param, k_x, k_sample = jax.random.split(key, 3)

    params = init_params(k_param, nvec_s, nvec_u)
    x = jax.random.normal(k_x, (batch, nvec_s), jnp.float32)

    action, log_prob, entropy = policy_net_forward(x, params, k_sample)
    jax.block_until_ready((action, log_prob, entropy))

    # Pure-JAX reference for the deterministic parts (same bf16/f32 dtype path).
    w1, b1, w2, b2, w3, b3 = params
    xb = x.astype(jnp.bfloat16)
    h1 = jnp.maximum(jnp.dot(xb, w1, preferred_element_type=jnp.float32) + b1, 0.0)
    h2 = jnp.maximum(jnp.dot(h1.astype(jnp.bfloat16), w2,
                             preferred_element_type=jnp.float32) + b2, 0.0)
    logits = jnp.dot(h2.astype(jnp.bfloat16), w3,
                     preferred_element_type=jnp.float32) + b3
    logp_ref = jax.nn.log_softmax(logits, axis=-1)
    ent_ref = -jnp.sum(jnp.exp(logp_ref) * logp_ref, axis=-1)
    lp_ref = jnp.take_along_axis(logp_ref, action[:, None], axis=-1)[:, 0]

    assert action.shape == (batch,) and action.dtype == jnp.int32
    assert log_prob.shape == (batch,) and entropy.shape == (batch,)
    assert bool(jnp.all(action >= 0)) and bool(jnp.all(action < nvec_u))
    assert bool(jnp.all(entropy >= 0.0)) and bool(jnp.all(log_prob <= 0.0))
    assert bool(jnp.all(entropy <= jnp.log(nvec_u) + 1e-3))
    assert bool(jnp.allclose(entropy, ent_ref, atol=2e-3, rtol=2e-3))
    assert bool(jnp.allclose(log_prob, lp_ref, atol=2e-3, rtol=2e-3))

    print("KERNEL_OK")
</pallas_src>

<mosaic_0001>
module attributes {stable_mosaic.version = 11 : i64} {
  func.func @_policy_kernel(%arg0: i32, %arg1: memref<128x32xbf16, #tpu.memory_space<vmem>>, %arg2: memref<128x8xf32, #tpu.memory_space<vmem>>, %arg3: memref<32x128xbf16, #tpu.memory_space<vmem>>, %arg4: memref<1x128xf32, #tpu.memory_space<vmem>>, %arg5: memref<128x64xbf16, #tpu.memory_space<vmem>>, %arg6: memref<1x64xf32, #tpu.memory_space<vmem>>, %arg7: memref<64x8xbf16, #tpu.memory_space<vmem>>, %arg8: memref<1x8xf32, #tpu.memory_space<vmem>>, %arg9: memref<3x128xf32, #tpu.memory_space<vmem>>) attributes {dimension_semantics = [#tpu.dimension_semantics<parallel>], iteration_bounds = array<i64: 2>, scalar_prefetch = 0 : i64, scratch_operands = 0 : i64, tpu.core_type = #tpu.core_type<tc>, window_params = [{transform_indices = @transform_0, window_bounds = array<i64: 128, 32>}, {transform_indices = @transform_1, window_bounds = array<i64: 128, 8>}, {pipeline_mode = #tpu.pipeline_mode<synchronous>, transform_indices = @transform_2, window_bounds = array<i64: 32, 128>}, {pipeline_mode = #tpu.pipeline_mode<synchronous>, transform_indices = @transform_3, window_bounds = array<i64: 1, 128>}, {pipeline_mode = #tpu.pipeline_mode<synchronous>, transform_indices = @transform_4, window_bounds = array<i64: 128, 64>}, {pipeline_mode = #tpu.pipeline_mode<synchronous>, transform_indices = @transform_5, window_bounds = array<i64: 1, 64>}, {pipeline_mode = #tpu.pipeline_mode<synchronous>, transform_indices = @transform_6, window_bounds = array<i64: 64, 8>}, {pipeline_mode = #tpu.pipeline_mode<synchronous>, transform_indices = @transform_7, window_bounds = array<i64: 1, 8>}, {transform_indices = @transform_8, window_bounds = array<i64: 3, 128>}]} {
    %c0 = arith.constant 0 : index
    %c0_0 = arith.constant 0 : index
    %0 = vector.load %arg1[%c0, %c0_0] : memref<128x32xbf16, #tpu.memory_space<vmem>>, vector<128x32xbf16>
    %c0_1 = arith.constant 0 : index
    %c0_2 = arith.constant 0 : index
    %1 = vector.load %arg3[%c0_1, %c0_2] : memref<32x128xbf16, #tpu.memory_space<vmem>>, vector<32x128xbf16>
    %cst = arith.constant dense<0.000000e+00> : vector<128x128xf32>
    %2 = tpu.matmul %0, %1, %cst {dimension_numbers = #tpu.dot_dimension_numbers<[1], [0], [0], [1], [0, 0, 1, 1], [], []>} : vector<128x32xbf16>, vector<32x128xbf16>, vector<128x128xf32> -> vector<128x128xf32>
    %c0_3 = arith.constant 0 : index
    %c0_4 = arith.constant 0 : index
    %3 = vector.load %arg4[%c0_3, %c0_4] : memref<1x128xf32, #tpu.memory_space<vmem>>, vector<1x128xf32>
    %4 = vector.broadcast %3 : vector<1x128xf32> to vector<128x128xf32>
    %5 = arith.addf %2, %4 : vector<128x128xf32>
    %cst_5 = arith.constant 0.000000e+00 : f32
    %6 = vector.broadcast %cst_5 : f32 to vector<128x128xf32>
    %7 = arith.maximumf %5, %6 : vector<128x128xf32>
    %8 = arith.truncf %7 : vector<128x128xf32> to vector<128x128xbf16>
    %c0_6 = arith.constant 0 : index
    %c0_7 = arith.constant 0 : index
    %9 = vector.load %arg5[%c0_6, %c0_7] : memref<128x64xbf16, #tpu.memory_space<vmem>>, vector<128x64xbf16>
    %cst_8 = arith.constant dense<0.000000e+00> : vector<128x64xf32>
    %10 = tpu.matmul %8, %9, %cst_8 {dimension_numbers = #tpu.dot_dimension_numbers<[1], [0], [0], [1], [0, 0, 1, 1], [], []>} : vector<128x128xbf16>, vector<128x64xbf16>, vector<128x64xf32> -> vector<128x64xf32>
    %c0_9 = arith.constant 0 : index
    %c0_10 = arith.constant 0 : index
    %11 = vector.load %arg6[%c0_9, %c0_10] : memref<1x64xf32, #tpu.memory_space<vmem>>, vector<1x64xf32>
    %12 = vector.broadcast %11 : vector<1x64xf32> to vector<128x64xf32>
    %13 = arith.addf %10, %12 : vector<128x64xf32>
    %cst_11 = arith.constant 0.000000e+00 : f32
    %14 = vector.broadcast %cst_11 : f32 to vector<128x64xf32>
    %15 = arith.maximumf %13, %14 : vector<128x64xf32>
    %16 = arith.truncf %15 : vector<128x64xf32> to vector<128x64xbf16>
    %c0_12 = arith.constant 0 : index
    %c0_13 = arith.constant 0 : index
    %17 = vector.load %arg7[%c0_12, %c0_13] : memref<64x8xbf16, #tpu.memory_space<vmem>>, vector<64x8xbf16>
    %cst_14 = arith.constant dense<0.000000e+00> : vector<128x8xf32>
    %18 = tpu.matmul %16, %17, %cst_14 {dimension_numbers = #tpu.dot_dimension_numbers<[1], [0], [0], [1], [0, 0, 1, 1], [], []>} : vector<128x64xbf16>, vector<64x8xbf16>, vector<128x8xf32> -> vector<128x8xf32>
    %c0_15 = arith.constant 0 : index
    %c0_16 = arith.constant 0 : index
    %19 = vector.load %arg8[%c0_15, %c0_16] : memref<1x8xf32, #tpu.memory_space<vmem>>, vector<1x8xf32>
    %20 = vector.broadcast %19 : vector<1x8xf32> to vector<128x8xf32>
    %21 = arith.addf %18, %20 : vector<128x8xf32>
    %cst_17 = arith.constant dense<0xFF800000> : vector<128xf32>
    %22 = vector.multi_reduction <maximumf>, %21, %cst_17 [1] : vector<128x8xf32> to vector<128xf32>
    %23 = vector.shape_cast %22 : vector<128xf32> to vector<128x1xf32>
    %24 = vector.broadcast %23 : vector<128x1xf32> to vector<128x8xf32>
    %25 = arith.subf %21, %24 : vector<128x8xf32>
    %26 = math.exp %25 : vector<128x8xf32>
    %cst_18 = arith.constant dense<0.000000e+00> : vector<128xf32>
    %27 = vector.multi_reduction <add>, %26, %cst_18 [1] : vector<128x8xf32> to vector<128xf32>
    %28 = vector.shape_cast %27 : vector<128xf32> to vector<128x1xf32>
    %29 = math.log %28 : vector<128x1xf32>
    %30 = vector.broadcast %29 : vector<128x1xf32> to vector<128x8xf32>
    %31 = arith.subf %25, %30 : vector<128x8xf32>
    %32 = arith.mulf %26, %25 : vector<128x8xf32>
    %cst_19 = arith.constant dense<0.000000e+00> : vector<128xf32>
    %33 = vector.multi_reduction <add>, %32, %cst_19 [1] : vector<128x8xf32> to vector<128xf32>
    %34 = vector.shape_cast %33 : vector<128xf32> to vector<128x1xf32>
    %35 = arith.divf %34, %28 : vector<128x1xf32>
    %36 = arith.subf %29, %35 : vector<128x1xf32>
    %cst_20 = arith.constant 0.000000e+00 : f32
    %37 = vector.broadcast %cst_20 : f32 to vector<128x1xf32>
    %38 = arith.maximumf %36, %37 : vector<128x1xf32>
    %c0_21 = arith.constant 0 : index
    %c0_22 = arith.constant 0 : index
    %39 = vector.load %arg2[%c0_21, %c0_22] : memref<128x8xf32, #tpu.memory_space<vmem>>, vector<128x8xf32>
    %40 = arith.addf %21, %39 : vector<128x8xf32>
    %cst_23 = arith.constant dense<0xFF800000> : vector<128xf32>
    %41 = vector.multi_reduction <maximumf>, %40, %cst_23 [1] : vector<128x8xf32> to vector<128xf32>
    %42 = vector.shape_cast %41 : vector<128xf32> to vector<128x1xf32>
    %43 = tpu.iota {dimensions = array<i32: 1>} : vector<128x8xi32>
    %44 = vector.broadcast %42 : vector<128x1xf32> to vector<128x8xf32>
    %45 = arith.cmpf oeq, %40, %44 : vector<128x8xf32>
    %c8_i32 = arith.constant 8 : i32
    %46 = vector.broadcast %c8_i32 : i32 to vector<128x8xi32>
    %47 = arith.select %45, %43, %46 : vector<128x8xi1>, vector<128x8xi32>
    %cst_24 = arith.constant dense<2147483647> : vector<128xi32>
    %48 = vector.multi_reduction <minsi>, %47, %cst_24 [1] : vector<128x8xi32> to vector<128xi32>
    %49 = vector.shape_cast %48 : vector<128xi32> to vector<128x1xi32>
    %50 = vector.broadcast %49 : vector<128x1xi32> to vector<128x8xi32>
    %51 = arith.cmpi eq, %43, %50 : vector<128x8xi32>
    %cst_25 = arith.constant 0.000000e+00 : f32
    %52 = vector.broadcast %cst_25 : f32 to vector<128x8xf32>
    %53 = arith.select %51, %31, %52 : vector<128x8xi1>, vector<128x8xf32>
    %cst_26 = arith.constant dense<0.000000e+00> : vector<128xf32>
    %54 = vector.multi_reduction <add>, %53, %cst_26 [1] : vector<128x8xf32> to vector<128xf32>
    %55 = vector.shape_cast %54 : vector<128xf32> to vector<128x1xf32>
    %cst_27 = arith.constant 0.000000e+00 : f32
    %56 = vector.broadcast %cst_27 : f32 to vector<128x1xf32>
    %57 = arith.minimumf %55, %56 : vector<128x1xf32>
    %58 = arith.sitofp %49 : vector<128x1xi32> to vector<128x1xf32>
    %59 = tpu.concatenate %58, %57, %38 in 1 : vector<128x1xf32>, vector<128x1xf32>, vector<128x1xf32> -> vector<128x3xf32>
    %60 = tpu.transpose %59, [1, 0] : vector<128x3xf32> -> vector<3x128xf32>
    %c0_28 = arith.constant 0 : index
    %c0_29 = arith.constant 0 : index
    %61 = vector.load %arg9[%c0_28, %c0_29] : memref<3x128xf32, #tpu.memory_space<vmem>>, vector<3x128xf32>
    tpu.vector_store %arg9[%c0_28, %c0_29], %60 {strides = array<i32>} : memref<3x128xf32, #tpu.memory_space<vmem>>, vector<3x128xf32>,
    return
  }
  func.func @transform_0(%arg0: i32) -> (i32, i32) {
    %c0_i32 = arith.constant 0 : i32
    %c0_i32_0 = arith.constant 0 : i32
    return %arg0, %c0_i32 : i32, i32
  }
  func.func @transform_1(%arg0: i32) -> (i32, i32) {
    %c0_i32 = arith.constant 0 : i32
    %c0_i32_0 = arith.constant 0 : i32
    return %arg0, %c0_i32 : i32, i32
  }
  func.func @transform_2(%arg0: i32) -> (i32, i32) {
    %c0_i32 = arith.constant 0 : i32
    %c0_i32_0 = arith.constant 0 : i32
    %c0_i32_1 = arith.constant 0 : i32
    return %c0_i32, %c0_i32_0 : i32, i32
  }
  func.func @transform_3(%arg0: i32) -> (i32, i32) {
    %c0_i32 = arith.constant 0 : i32
    %c0_i32_0 = arith.constant 0 : i32
    %c0_i32_1 = arith.constant 0 : i32
    return %c0_i32, %c0_i32_0 : i32, i32
  }
  func.func @transform_4(%arg0: i32) -> (i32, i32) {
    %c0_i32 = arith.constant 0 : i32
    %c0_i32_0 = arith.constant 0 : i32
    %c0_i32_1 = arith.constant 0 : i32
    return %c0_i32, %c0_i32_0 : i32, i32
  }
  func.func @transform_5(%arg0: i32) -> (i32, i32) {
    %c0_i32 = arith.constant 0 : i32
    %c0_i32_0 = arith.constant 0 : i32
    %c0_i32_1 = arith.constant 0 : i32
    return %c0_i32, %c0_i32_0 : i32, i32
  }
  func.func @transform_6(%arg0: i32) -> (i32, i32) {
    %c0_i32 = arith.constant 0 : i32
    %c0_i32_0 = arith.constant 0 : i32
    %c0_i32_1 = arith.constant 0 : i32
    return %c0_i32, %c0_i32_0 : i32, i32
  }
  func.func @transform_7(%arg0: i32) -> (i32, i32) {
    %c0_i32 = arith.constant 0 : i32
    %c0_i32_0 = arith.constant 0 : i32
    %c0_i32_1 = arith.constant 0 : i32
    return %c0_i32, %c0_i32_0 : i32, i32
  }
  func.func @transform_8(%arg0: i32) -> (i32, i32) {
    %c0_i32 = arith.constant 0 : i32
    %c0_i32_0 = arith.constant 0 : i32
    return %c0_i32, %arg0 : i32, i32
  }
}

</mosaic_0001>

<llo_original>
// kernel: policy_net_forward.1
$region0: #{policy_net_forward.1}
  #allocation0 [shape = 'u32[]', space=smem, size = 0x4, offset = 0x4, fixed_abs, tag = 'smem constant byte address 0x4 - core index']
  #allocation1 [shape = 'u32[72,128]{1,0:T(1,128)}', space=vmem, size = 0x9000, scoped, tag = 'internal scratch']
  %s0 = inlined_call_operand.vmem [shape: bf16[256,32], index: 0, kind: input, shape index: {}]
  %s1 = inlined_call_operand.vmem [shape: f32[256,8], index: 1, kind: input, shape index: {}]
  %s2 = inlined_call_operand.vmem [shape: bf16[32,128], index: 2, kind: input, shape index: {}]
  %s3 = inlined_call_operand.vmem [shape: f32[1,128], index: 3, kind: input, shape index: {}]
  %s4 = inlined_call_operand.vmem [shape: bf16[128,64], index: 4, kind: input, shape index: {}]
  %s5 = inlined_call_operand.vmem [shape: f32[1,64], index: 5, kind: input, shape index: {}]
  %s6 = inlined_call_operand.vmem [shape: bf16[64,8], index: 6, kind: input, shape index: {}]
  %s7 = inlined_call_operand.vmem [shape: f32[1,8], index: 7, kind: input, shape index: {}]
  %s8 = inlined_call_operand.vmem [shape: f32[3,256], index: 8, kind: output, shape index: {}]
  %s9 = sld [smem:[#allocation0]]
  $region65: #{policy_net_forward.1} parent=0
    _
  %s11 = ssub.s32 1, %s9
  %s12 = scalar_select 0, %s11, %s9
  loop: start=0, step=1, limit=4
  $region2: #{policy_net_forward.1} parent=0 // loop_pre_header
    _
  $region3: #{policy_net_forward.1} parent=0 // loop_header
    %s14 = sphi 0, %s18
    %p15 = scmp.ge.s32.totalorder %s14, 4
    %s24 = sphi 0, %s26
    %s27 = sphi 0, %s24
    %s28 = sphi 0, %s27
    %s44 = sphi 0, %s28
    %s50 = sphi 0, %s52
    %s53 = sphi 0, %s50
    %s54 = sphi 0, %s53
    %s70 = sphi 0, %s54
    %s74 = sphi 0, %s74
    %s76 = sphi 0, %s74
    %s77 = sphi 0, %s76
    %s91 = sphi 0, %s77
    %s95 = sphi 0, %s95
    %s97 = sphi 0, %s95
    %s98 = sphi 0, %s97
    %s112 = sphi 0, %s98
    %s116 = sphi 0, %s116
    %s118 = sphi 0, %s116
    %s119 = sphi 0, %s118
    %s133 = sphi 0, %s119
    %s137 = sphi 0, %s137
    %s139 = sphi 0, %s137
    %s140 = sphi 0, %s139
    %s154 = sphi 0, %s140
    %s158 = sphi 0, %s158
    %s160 = sphi 0, %s158
    %s161 = sphi 0, %s160
    %s175 = sphi 0, %s161
    %s179 = sphi 0, %s179
    %s181 = sphi 0, %s179
    %s182 = sphi 0, %s181
    %s196 = sphi 0, %s182
    %s202 = sphi 0, %s204
    %s205 = sphi 0, %s202
    %s206 = sphi 0, %s205
    %s222 = sphi 0, %s206
  $region4: #{policy_net_forward.1} parent=0 // loop_header_branch
    %17 = sbr.rel (%p15) target = $region8
  $region5: #{policy_net_forward.1} parent=0 // loop_body
    %s19 = ssub.s32 %s14, 1
    %s20 = ssub.s32 %s14, 2
    %s21 = sadd.s32 %s14, 1
    %s22 = ssub.s32 %s14, %s21
    %p23 = scmp.eq.s32.totalorder %s22, 0
    %s25 = sadd.s32 %s24, 1
    %s26 = scalar_select %p23, %s24, %s25
    %p29 = pneg %p23
    %p30 = scmp.eq.s32.totalorder %s14, 1
    %p31 = por %p29, %p30
    %p32 = scmp.ne.s32.totalorder %s24, %s27
    %p33 = scmp.eq.s32.totalorder %s14, 0
    %p34 = por %p32, %p33
    %p35 = scmp.ne.s32.totalorder %s24, %s27
    %p36 = scmp.eq.s32.totalorder %s19, 1
    %p37 = por %p35, %p36
    %p38 = scmp.ne.s32.totalorder %s27, %s28
    %p39 = scmp.eq.s32.totalorder %s19, 0
    %p40 = por %p38, %p39
    %p41 = scmp.ne.s32.totalorder %s27, %s28
    %p42 = scmp.eq.s32.totalorder %s20, 1
    %p43 = por %p41, %p42
    %p45 = scmp.ne.s32.totalorder %s28, %s44
    %p46 = scmp.eq.s32.totalorder %s20, 0
    %p47 = por %p45, %p46
    %s48 = ssub.s32 %s14, %s21
    %p49 = scmp.eq.s32.totalorder %s48, 0
    %s51 = sadd.s32 %s50, 1
    %s52 = scalar_select %p49, %s50, %s51
    %p55 = pneg %p49
    %p56 = scmp.eq.s32.totalorder %s14, 1
    %p57 = por %p55, %p56
    %p58 = scmp.ne.s32.totalorder %s50, %s53
    %p59 = scmp.eq.s32.totalorder %s14, 0
    %p60 = por %p58, %p59
    %p61 = scmp.ne.s32.totalorder %s50, %s53
    %p62 = scmp.eq.s32.totalorder %s19, 1
    %p63 = por %p61, %p62
    %p64 = scmp.ne.s32.totalorder %s53, %s54
    %p65 = scmp.eq.s32.totalorder %s19, 0
    %p66 = por %p64, %p65
    %p67 = scmp.ne.s32.totalorder %s53, %s54
    %p68 = scmp.eq.s32.totalorder %s20, 1
    %p69 = por %p67, %p68
    %p71 = scmp.ne.s32.totalorder %s54, %s70
    %p72 = scmp.eq.s32.totalorder %s20, 0
    %p73 = por %p71, %p72
    %s75 = sadd.s32 %s74, 1
    %p78 = scmp.eq.s32.totalorder %s14, 1
    %p79 = scmp.ne.s32.totalorder %s74, %s76
    %p80 = scmp.eq.s32.totalorder %s14, 0
    %p81 = por %p79, %p80
    %p82 = scmp.ne.s32.totalorder %s74, %s76
    %p83 = scmp.eq.s32.totalorder %s19, 1
    %p84 = por %p82, %p83
    %p85 = scmp.ne.s32.totalorder %s76, %s77
    %p86 = scmp.eq.s32.totalorder %s19, 0
    %p87 = por %p85, %p86
    %p88 = scmp.ne.s32.totalorder %s76, %s77
    %p89 = scmp.eq.s32.totalorder %s20, 1
    %p90 = por %p88, %p89
    %p92 = scmp.ne.s32.totalorder %s77, %s91
    %p93 = scmp.eq.s32.totalorder %s20, 0
    %p94 = por %p92, %p93
    %s96 = sadd.s32 %s95, 1
    %p99 = scmp.eq.s32.totalorder %s14, 1
    %p100 = scmp.ne.s32.totalorder %s95, %s97
    %p101 = scmp.eq.s32.totalorder %s14, 0
    %p102 = por %p100, %p101
    %p103 = scmp.ne.s32.totalorder %s95, %s97
    %p104 = scmp.eq.s32.totalorder %s19, 1
    %p105 = por %p103, %p104
    %p106 = scmp.ne.s32.totalorder %s97, %s98
    %p107 = scmp.eq.s32.totalorder %s19, 0
    %p108 = por %p106, %p107
    %p109 = scmp.ne.s32.totalorder %s97, %s98
    %p110 = scmp.eq.s32.totalorder %s20, 1
    %p111 = por %p109, %p110
    %p113 = scmp.ne.s32.totalorder %s98, %s112
    %p114 = scmp.eq.s32.totalorder %s20, 0
    %p115 = por %p113, %p114
    %s117 = sadd.s32 %s116, 1
    %p120 = scmp.eq.s32.totalorder %s14, 1
    %p121 = scmp.ne.s32.totalorder %s116, %s118
    %p122 = scmp.eq.s32.totalorder %s14, 0
    %p123 = por %p121, %p122
    %p124 = scmp.ne.s32.totalorder %s116, %s118
    %p125 = scmp.eq.s32.totalorder %s19, 1
    %p126 = por %p124, %p125
    %p127 = scmp.ne.s32.totalorder %s118, %s119
    %p128 = scmp.eq.s32.totalorder %s19, 0
    %p129 = por %p127, %p128
    %p130 = scmp.ne.s32.totalorder %s118, %s119
    %p131 = scmp.eq.s32.totalorder %s20, 1
    %p132 = por %p130, %p131
    %p134 = scmp.ne.s32.totalorder %s119, %s133
    %p135 = scmp.eq.s32.totalorder %s20, 0
    %p136 = por %p134, %p135
    %s138 = sadd.s32 %s137, 1
    %p141 = scmp.eq.s32.totalorder %s14, 1
    %p142 = scmp.ne.s32.totalorder %s137, %s139
    %p143 = scmp.eq.s32.totalorder %s14, 0
    %p144 = por %p142, %p143
    %p145 = scmp.ne.s32.totalorder %s137, %s139
    %p146 = scmp.eq.s32.totalorder %s19, 1
    %p147 = por %p145, %p146
    %p148 = scmp.ne.s32.totalorder %s139, %s140
    %p149 = scmp.eq.s32.totalorder %s19, 0
    %p150 = por %p148, %p149
    %p151 = scmp.ne.s32.totalorder %s139, %s140
    %p152 = scmp.eq.s32.totalorder %s20, 1
    %p153 = por %p151, %p152
    %p155 = scmp.ne.s32.totalorder %s140, %s154
    %p156 = scmp.eq.s32.totalorder %s20, 0
    %p157 = por %p155, %p156
    %s159 = sadd.s32 %s158, 1
    %p162 = scmp.eq.s32.totalorder %s14, 1
    %p163 = scmp.ne.s32.totalorder %s158, %s160
    %p164 = scmp.eq.s32.totalorder %s14, 0
    %p165 = por %p163, %p164
    %p166 = scmp.ne.s32.totalorder %s158, %s160
    %p167 = scmp.eq.s32.totalorder %s19, 1
    %p168 = por %p166, %p167
    %p169 = scmp.ne.s32.totalorder %s160, %s161
    %p170 = scmp.eq.s32.totalorder %s19, 0
    %p171 = por %p169, %p170
    %p172 = scmp.ne.s32.totalorder %s160, %s161
    %p173 = scmp.eq.s32.totalorder %s20, 1
    %p174 = por %p172, %p173
    %p176 = scmp.ne.s32.totalorder %s161, %s175
    %p177 = scmp.eq.s32.totalorder %s20, 0
    %p178 = por %p176, %p177
    %s180 = sadd.s32 %s179, 1
    %p183 = scmp.eq.s32.totalorder %s14, 1
    %p184 = scmp.ne.s32.totalorder %s179, %s181
    %p185 = scmp.eq.s32.totalorder %s14, 0
    %p186 = por %p184, %p185
    %p187 = scmp.ne.s32.totalorder %s179, %s181
    %p188 = scmp.eq.s32.totalorder %s19, 1
    %p189 = por %p187, %p188
    %p190 = scmp.ne.s32.totalorder %s181, %s182
    %p191 = scmp.eq.s32.totalorder %s19, 0
    %p192 = por %p190, %p191
    %p193 = scmp.ne.s32.totalorder %s181, %s182
    %p194 = scmp.eq.s32.totalorder %s20, 1
    %p195 = por %p193, %p194
    %p197 = scmp.ne.s32.totalorder %s182, %s196
    %p198 = scmp.eq.s32.totalorder %s20, 0
    %p199 = por %p197, %p198
    %s200 = ssub.s32 %s14, %s21
    %p201 = scmp.eq.s32.totalorder %s200, 0
    %s203 = sadd.s32 %s202, 1
    %s204 = scalar_select %p201, %s202, %s203
    %p207 = pneg %p201
    %p208 = scmp.eq.s32.totalorder %s14, 1
    %p209 = por %p207, %p208
    %p210 = scmp.ne.s32.totalorder %s202, %s205
    %p211 = scmp.eq.s32.totalorder %s14, 0
    %p212 = por %p210, %p211
    %p213 = scmp.ne.s32.totalorder %s202, %s205
    %p214 = scmp.eq.s32.totalorder %s19, 1
    %p215 = por %p213, %p214
    %p216 = scmp.ne.s32.totalorder %s205, %s206
    %p217 = scmp.eq.s32.totalorder %s19, 0
    %p218 = por %p216, %p217
    %p219 = scmp.ne.s32.totalorder %s205, %s206
    %p220 = scmp.eq.s32.totalorder %s20, 1
    %p221 = por %p219, %p220
    %p223 = scmp.ne.s32.totalorder %s206, %s222
    %p224 = scmp.eq.s32.totalorder %s20, 0
    %p225 = por %p223, %p224
    %p226 = scmp.le.s32.totalorder 1, %s14
    %p227 = scmp.lt.s32.totalorder %s14, 3
    %p228 = pnand %p226, %p227
    %p229 = pneg %p228
    // Predicated region
    $region9: #{policy_net_forward.1} parent=5 // pred_check
      _
    $region10: #{policy_net_forward.1} parent=5 // pred_check_branch
      %231 = sbr.rel (%p228) target = $region12
    $region11: #{policy_net_forward.1} parent=5 // pred_region
      %s232 = ssub.s32 %s14, 1
      // Predicated region
      $region13: #{policy_net_forward.1} parent=11 // pred_check
        %p233 = pneg %p87
      $region14: #{policy_net_forward.1} parent=11 // pred_check_branch
        %235 = sbr.rel (%p233) target = $region16
      $region15: #{policy_net_forward.1} parent=11 // pred_region
        _
      $region16: #{policy_net_forward.1} parent=11 // pred_fallthru
        _
      // Predicated region
      $region17: #{policy_net_forward.1} parent=11 // pred_check
        %p236 = pneg %p108
      $region18: #{policy_net_forward.1} parent=11 // pred_check_branch
        %238 = sbr.rel (%p236) target = $region20
      $region19: #{policy_net_forward.1} parent=11 // pred_region
        _
      $region20: #{policy_net_forward.1} parent=11 // pred_fallthru
        _
      // Predicated region
      $region21: #{policy_net_forward.1} parent=11 // pred_check
        %p239 = pneg %p129
      $region22: #{policy_net_forward.1} parent=11 // pred_check_branch
        %241 = sbr.rel (%p239) target = $region24
      $region23: #{policy_net_forward.1} parent=11 // pred_region
        _
      $region24: #{policy_net_forward.1} parent=11 // pred_fallthru
        _
      // Predicated region
      $region25: #{policy_net_forward.1} parent=11 // pred_check
        %p242 = pneg %p150
      $region26: #{policy_net_forward.1} parent=11 // pred_check_branch
        %244 = sbr.rel (%p242) target = $region28
      $region27: #{policy_net_forward.1} parent=11 // pred_region
        _
      $region28: #{policy_net_forward.1} parent=11 // pred_fallthru
        _
      // Predicated region
      $region29: #{policy_net_forward.1} parent=11 // pred_check
        %p245 = pneg %p171
      $region30: #{policy_net_forward.1} parent=11 // pred_check_branch
        %247 = sbr.rel (%p245) target = $region32
      $region31: #{policy_net_forward.1} parent=11 // pred_region
        _
      $region32: #{policy_net_forward.1} parent=11 // pred_fallthru
        _
      // Predicated region
      $region33: #{policy_net_forward.1} parent=11 // pred_check
        %p248 = pneg %p192
      $region34: #{policy_net_forward.1} parent=11 // pred_check_branch
        %250 = sbr.rel (%p248) target = $region36
      $region35: #{policy_net_forward.1} parent=11 // pred_region
        _
      $region36: #{policy_net_forward.1} parent=11 // pred_fallthru
        _
    $region12: #{policy_net_forward.1} parent=5 // pred_fallthru
      _
    %p251 = scmp.lt.s32.totalorder %s14, 2
    // Predicated region
    $region37: #{policy_net_forward.1} parent=5 // pred_check
      %p252 = pneg %p251
    $region38: #{policy_net_forward.1} parent=5 // pred_check_branch
      %254 = sbr.rel (%p252) target = $region40
    $region39: #{policy_net_forward.1} parent=5 // pred_region
      // Predicated region
      $region41: #{policy_net_forward.1} parent=39 // pred_check
        %p255 = pneg %p34
      $region42: #{policy_net_forward.1} parent=39 // pred_check_branch
        %257 = sbr.rel (%p255) target = $region44
      $region43: #{policy_net_forward.1} parent=39 // pred_region
        %s258 = smul.u32 16, %s14
        %p259 = scmp.lt.s32.totalorder %s258, 31
        %s260 = scalar_select %p259, %s258, 31
        %s261 = smul.addr %s260, 4
        %s262 = scalar_lea.vmem %s0, %s261
        %s263 = smul.u32 16, %s14
      $region44: #{policy_net_forward.1} parent=39 // pred_fallthru
        _
      // Predicated region
      $region45: #{policy_net_forward.1} parent=39 // pred_check
        %p264 = pneg %p60
      $region46: #{policy_net_forward.1} parent=39 // pred_check_branch
        %266 = sbr.rel (%p264) target = $region48
      $region47: #{policy_net_forward.1} parent=39 // pred_region
        %s267 = smul.u32 16, %s14
        %p268 = scmp.lt.s32.totalorder %s267, 31
        %s269 = scalar_select %p268, %s267, 31
        %s270 = smul.addr %s269, 8
        %s271 = scalar_lea.vmem %s1, %s270
        %s272 = smul.u32 16, %s14
      $region48: #{policy_net_forward.1} parent=39 // pred_fallthru
        _
    $region40: #{policy_net_forward.1} parent=5 // pred_fallthru
      _
    %p273 = scmp.le.s32.totalorder 1, %s14
    %p274 = scmp.lt.s32.totalorder %s14, 3
    %p275 = pnand %p273, %p274
    %p276 = pneg %p275
    // Predicated region
    $region49: #{policy_net_forward.1} parent=5 // pred_check
      _
    $region50: #{policy_net_forward.1} parent=5 // pred_check_branch
      %278 = sbr.rel (%p275) target = $region52
    $region51: #{policy_net_forward.1} parent=5 // pred_region
      %s279 = ssub.s32 %s14, 1
      %s280 = smul.u32 16, %s19
      %p281 = scmp.lt.s32.totalorder %s280, 31
      %s282 = scalar_select %p281, %s280, 31
      %s283 = smul.addr %s282, 4
      %s284 = scalar_lea.vmem %s0, %s283
      %p285 = pneg %p40
      %p286 = pneg %p37
      %s287 = smul.u32 16, %s19
      %p288 = scmp.lt.s32.totalorder %s287, 31
      %s289 = scalar_select %p288, %s287, 31
      %s290 = smul.addr %s289, 8
      %s291 = scalar_lea.vmem %s1, %s290
      %p292 = pneg %p66
      %p293 = pneg %p63
      %p294 = pneg %p87
      %p295 = pneg %p84
      %p296 = pneg %p108
      %p297 = pneg %p105
      %p298 = pneg %p129
      %p299 = pneg %p126
      %p300 = pneg %p150
      %p301 = pneg %p147
      %p302 = pneg %p171
      %p303 = pneg %p168
      %p304 = pneg %p192
      %p305 = pneg %p189
      %p306 = pneg %p218
      %p307 = pneg %p215
      %p308 = scmp.lt.s32.totalorder %s19, 1
      %s309 = scalar_select %p308, %s19, 1
      %s310 = smul.addr %s309, 4
      %s311 = scalar_lea.vmem %s8, %s310
      %s312 = smul.u32 16, %s19
      %p313 = scmp.lt.s32.totalorder %s312, 31
      %s314 = scalar_select %p313, %s312, 31
      %s315 = smul.addr %s314, 4
      %s316 = scalar_lea.vmem %s0, %s315
      %s317 = smul.u32 16, %s19
      %s318 = smul.u32 16, %s19
      %p319 = scmp.lt.s32.totalorder %s318, 31
      %s320 = scalar_select %p319, %s318, 31
      %s321 = smul.addr %s320, 8
      %s322 = scalar_lea.vmem %s1, %s321
      %s323 = smul.u32 16, %s19
      %p324 = scmp.lt.s32.totalorder %s19, 1
      %s325 = scalar_select %p324, %s19, 1
      %s326 = smul.addr %s325, 4
      %s327 = scalar_lea.vmem %s8, %s326
      %v329 = vld [vmem:[%s316] sm:$0xf]
      %v330 = vld [vmem:[%s316 + $0x4] sm:$0xf]
      %v331 = vld [vmem:[%s316 + $0x8] sm:$0xf]
      %v332 = vld [vmem:[%s316 + $0xc] sm:$0xf]
      %v333 = vld [vmem:[%s316 + $0x10] sm:$0xf]
      %v334 = vld [vmem:[%s316 + $0x14] sm:$0xf]
      %v335 = vld [vmem:[%s316 + $0x18] sm:$0xf]
      %v336 = vld [vmem:[%s316 + $0x1c] sm:$0xf]
      %v337 = vld [vmem:[%s316 + $0x20] sm:$0xf]
      %v338 = vld [vmem:[%s316 + $0x24] sm:$0xf]
      %v339 = vld [vmem:[%s316 + $0x28] sm:$0xf]
      %v340 = vld [vmem:[%s316 + $0x2c] sm:$0xf]
      %v341 = vld [vmem:[%s316 + $0x30] sm:$0xf]
      %v342 = vld [vmem:[%s316 + $0x34] sm:$0xf]
      %v343 = vld [vmem:[%s316 + $0x38] sm:$0xf]
      %v344 = vld [vmem:[%s316 + $0x3c] sm:$0xf]
      %v345 = vld [vmem:[%s2] sm:$0xf]
      %v346 = vld [vmem:[%s2 + $0x4] sm:$0xf]
      %v347 = vld [vmem:[%s2 + $0x8] sm:$0xf]
      %v348 = vld [vmem:[%s2 + $0xc] sm:$0xf]
      %v349 = vld [vmem:[%s3] sm:$0x1]
      %v351 = vperm.slane %v349, 0
      %v369 = vunpack.c.l.b16 %v329
      %v370 = vunpack.c.l.b16 %v330
      %v371 = vunpack.c.l.b16 %v331
      %v372 = vunpack.c.l.b16 %v332
      %v373 = vunpack.c.l.b16 %v333
      %v374 = vunpack.c.l.b16 %v334
      %v375 = vunpack.c.l.b16 %v335
      %v376 = vunpack.c.l.b16 %v336
      %v377 = vunpack.c.l.b16 %v337
      %v378 = vunpack.c.l.b16 %v338
      %v379 = vunpack.c.l.b16 %v339
      %v380 = vunpack.c.l.b16 %v340
      %v381 = vunpack.c.l.b16 %v341
      %v382 = vunpack.c.l.b16 %v342
      %v383 = vunpack.c.l.b16 %v343
      %v384 = vunpack.c.l.b16 %v344
      %v385 = vpack.c.b16 %v370, %v369
      %v386 = vpack.c.b16 %v372, %v371
      %v387 = vpack.c.b16 %v374, %v373
      %v388 = vpack.c.b16 %v376, %v375
      %v389 = vpack.c.b16 %v378, %v377
      %v390 = vpack.c.b16 %v380, %v379
      %v391 = vpack.c.b16 %v382, %v381
      %v392 = vpack.c.b16 %v384, %v383
      %v397 = vunpack.c.l.b16 %v345
      %v398 = vunpack.c.l.b16 %v346
      %v399 = vunpack.c.l.b16 %v347
      %v400 = vunpack.c.l.b16 %v348
      %v401 = vpack.c.b16 %v398, %v397
      %v402 = vpack.c.b16 %v400, %v399
      %vm405 = vcmask 261120
      %v407 = vsel %vm405, %v385, 0
      %v410 = vsel %vm405, %v386, 0
      %v413 = vsel %vm405, %v387, 0
      %v416 = vsel %vm405, %v388, 0
      %v419 = vsel %vm405, %v389, 0
      %v422 = vsel %vm405, %v390, 0
      %v425 = vsel %vm405, %v391, 0
      %v428 = vsel %vm405, %v392, 0
      %430 = vmatpush.bf16.msra.mxu0 0
      %431 = vmatpush.bf16.msra.mxu0 0
      %432 = vmatpush.bf16.msra.mxu0 0
      %433 = vmatpush.bf16.msra.mxu0 0
      %434 = vmatpush.bf16.msra.mxu0 0
      %435 = vmatpush.bf16.msra.mxu0 0
      %436 = vmatpush.bf16.msra.mxu0 %v402
      %437 = vmatpush.bf16.msra.mxu0 %v401
      %438 = vmatmul.bf16.gmra.mxu0 %v407
      %v439 = vpop.f32.mrf.mxu0
      %v440 = vadd.f32 %v351, %v439
      %v441 = vpop.f32.mrf.mxu0
      %v442 = vadd.f32 %v351, %v441
      %443 = vmatmul.bf16.gmra.mxu0 %v410
      %v444 = vpop.f32.mrf.mxu0
      %v445 = vadd.f32 %v351, %v444
      %v446 = vpop.f32.mrf.mxu0
      %v447 = vadd.f32 %v351, %v446
      %448 = vmatmul.bf16.gmra.mxu0 %v413
      %v449 = vpop.f32.mrf.mxu0
      %v450 = vadd.f32 %v351, %v449
      %v451 = vpop.f32.mrf.mxu0
      %v452 = vadd.f32 %v351, %v451
      %453 = vmatmul.bf16.gmra.mxu0 %v416
      %v454 = vpop.f32.mrf.mxu0
      %v455 = vadd.f32 %v351, %v454
      %v456 = vpop.f32.mrf.mxu0
      %v457 = vadd.f32 %v351, %v456
      %458 = vmatmul.bf16.gmra.mxu0 %v419
      %v459 = vpop.f32.mrf.mxu0
      %v460 = vadd.f32 %v351, %v459
      %v461 = vpop.f32.mrf.mxu0
      %v462 = vadd.f32 %v351, %v461
      %463 = vmatmul.bf16.gmra.mxu0 %v422
      %v464 = vpop.f32.mrf.mxu0
      %v465 = vadd.f32 %v351, %v464
      %v466 = vpop.f32.mrf.mxu0
      %v467 = vadd.f32 %v351, %v466
      %468 = vmatmul.bf16.gmra.mxu0 %v425
      %v469 = vpop.f32.mrf.mxu0
      %v470 = vadd.f32 %v351, %v469
      %v471 = vpop.f32.mrf.mxu0
      %v472 = vadd.f32 %v351, %v471
      %473 = vmatmul.bf16.gmra.mxu0 %v428
      %v474 = vpop.f32.mrf.mxu0
      %v475 = vadd.f32 %v351, %v474
      %v476 = vpop.f32.mrf.mxu0
      %v477 = vadd.f32 %v351, %v476
      %478 = vdwg.mxu0
      %v479 = vmax.f32 %v440, 0.0
      %v480 = vmax.f32 %v442, 0.0
      %v481 = vmax.f32 %v445, 0.0
      %v482 = vmax.f32 %v447, 0.0
      %v483 = vmax.f32 %v450, 0.0
      %v484 = vmax.f32 %v452, 0.0
      %v485 = vmax.f32 %v455, 0.0
      %v486 = vmax.f32 %v457, 0.0
      %v487 = vmax.f32 %v460, 0.0
      %v488 = vmax.f32 %v462, 0.0
      %v489 = vmax.f32 %v465, 0.0
      %v490 = vmax.f32 %v467, 0.0
      %v491 = vmax.f32 %v470, 0.0
      %v492 = vmax.f32 %v472, 0.0
      %v493 = vmax.f32 %v475, 0.0
      %v494 = vmax.f32 %v477, 0.0
      %v495 = vpack.c.bf16 %v480, %v479
      %v496 = vpack.c.bf16 %v482, %v481
      %v497 = vpack.c.bf16 %v484, %v483
      %v498 = vpack.c.bf16 %v486, %v485
      %v499 = vpack.c.bf16 %v488, %v487
      %v500 = vpack.c.bf16 %v490, %v489
      %v501 = vpack.c.bf16 %v492, %v491
      %v502 = vpack.c.bf16 %v494, %v493
      %v503 = vld [vmem:[%s4] sm:$0xf]
      %v504 = vld [vmem:[%s4 + $0x4] sm:$0xf]
      %v505 = vld [vmem:[%s4 + $0x8] sm:$0xf]
      %v506 = vld [vmem:[%s4 + $0xc] sm:$0xf]
      %v507 = vld [vmem:[%s4 + $0x10] sm:$0xf]
      %v508 = vld [vmem:[%s4 + $0x14] sm:$0xf]
      %v509 = vld [vmem:[%s4 + $0x18] sm:$0xf]
      %v510 = vld [vmem:[%s4 + $0x1c] sm:$0xf]
      %v511 = vld [vmem:[%s4 + $0x20] sm:$0xf]
      %v512 = vld [vmem:[%s4 + $0x24] sm:$0xf]
      %v513 = vld [vmem:[%s4 + $0x28] sm:$0xf]
      %v514 = vld [vmem:[%s4 + $0x2c] sm:$0xf]
      %v515 = vld [vmem:[%s4 + $0x30] sm:$0xf]
      %v516 = vld [vmem:[%s4 + $0x34] sm:$0xf]
      %v517 = vld [vmem:[%s4 + $0x38] sm:$0xf]
      %v518 = vld [vmem:[%s4 + $0x3c] sm:$0xf]
      %v519 = vld [vmem:[%s5] sm:$0x1]
      %v521 = vperm.slane %v519, 0
      %v539 = vunpack.c.l.b16 %v503
      %v540 = vunpack.c.l.b16 %v504
      %v541 = vunpack.c.l.b16 %v505
      %v542 = vunpack.c.l.b16 %v506
      %v543 = vunpack.c.l.b16 %v507
      %v544 = vunpack.c.l.b16 %v508
      %v545 = vunpack.c.l.b16 %v509
      %v546 = vunpack.c.l.b16 %v510
      %v547 = vunpack.c.l.b16 %v511
      %v548 = vunpack.c.l.b16 %v512
      %v549 = vunpack.c.l.b16 %v513
      %v550 = vunpack.c.l.b16 %v514
      %v551 = vunpack.c.l.b16 %v515
      %v552 = vunpack.c.l.b16 %v516
      %v553 = vunpack.c.l.b16 %v517
      %v554 = vunpack.c.l.b16 %v518
      %v555 = vpack.c.b16 %v540, %v539
      %v556 = vpack.c.b16 %v542, %v541
      %v557 = vpack.c.b16 %v544, %v543
      %v558 = vpack.c.b16 %v546, %v545
      %v559 = vpack.c.b16 %v548, %v547
      %v560 = vpack.c.b16 %v550, %v549
      %v561 = vpack.c.b16 %v552, %v551
      %v562 = vpack.c.b16 %v554, %v553
      %571 = vmatpush.bf16.msra.mxu0 %v562
      %572 = vmatpush.bf16.msra.mxu0 %v561
      %573 = vmatpush.bf16.msra.mxu0 %v560
      %574 = vmatpush.bf16.msra.mxu0 %v559
      %575 = vmatpush.bf16.msra.mxu0 %v558
      %576 = vmatpush.bf16.msra.mxu0 %v557
      %577 = vmatpush.bf16.msra.mxu0 %v556
      %578 = vmatpush.bf16.msra.mxu0 %v555
      %579 = vmatmul.bf16.gmra.mxu0 %v495
      %v580 = vpop.f32.mrf.mxu0
      %v581 = vadd.f32 %v521, %v580
      %v582 = vpop.f32.mrf.mxu0
      %v583 = vadd.f32 %v521, %v582
      %584 = vmatmul.bf16.gmra.mxu0 %v496
      %v585 = vpop.f32.mrf.mxu0
      %v586 = vadd.f32 %v521, %v585
      %v587 = vpop.f32.mrf.mxu0
      %v588 = vadd.f32 %v521, %v587
      %589 = vmatmul.bf16.gmra.mxu0 %v497
      %v590 = vpop.f32.mrf.mxu0
      %v591 = vadd.f32 %v521, %v590
      %v592 = vpop.f32.mrf.mxu0
      %v593 = vadd.f32 %v521, %v592
      %594 = vmatmul.bf16.gmra.mxu0 %v498
      %v595 = vpop.f32.mrf.mxu0
      %v596 = vadd.f32 %v521, %v595
      %v597 = vpop.f32.mrf.mxu0
      %v598 = vadd.f32 %v521, %v597
      %599 = vmatmul.bf16.gmra.mxu0 %v499
      %v600 = vpop.f32.mrf.mxu0
      %v601 = vadd.f32 %v521, %v600
      %v602 = vpop.f32.mrf.mxu0
      %v603 = vadd.f32 %v521, %v602
      %604 = vmatmul.bf16.gmra.mxu0 %v500
      %v605 = vpop.f32.mrf.mxu0
      %v606 = vadd.f32 %v521, %v605
      %v607 = vpop.f32.mrf.mxu0
      %v608 = vadd.f32 %v521, %v607
      %609 = vmatmul.bf16.gmra.mxu0 %v501
      %v610 = vpop.f32.mrf.mxu0
      %v611 = vadd.f32 %v521, %v610
      %v612 = vpop.f32.mrf.mxu0
      %v613 = vadd.f32 %v521, %v612
      %614 = vmatmul.bf16.gmra.mxu0 %v502
      %v615 = vpop.f32.mrf.mxu0
      %v616 = vadd.f32 %v521, %v615
      %v617 = vpop.f32.mrf.mxu0
      %v618 = vadd.f32 %v521, %v617
      %619 = vdwg.mxu0
      %v620 = vmax.f32 %v581, 0.0
      %v621 = vmax.f32 %v583, 0.0
      %v622 = vmax.f32 %v586, 0.0
      %v623 = vmax.f32 %v588, 0.0
      %v624 = vmax.f32 %v591, 0.0
      %v625 = vmax.f32 %v593, 0.0
      %v626 = vmax.f32 %v596, 0.0
      %v627 = vmax.f32 %v598, 0.0
      %v628 = vmax.f32 %v601, 0.0
      %v629 = vmax.f32 %v603, 0.0
      %v630 = vmax.f32 %v606, 0.0
      %v631 = vmax.f32 %v608, 0.0
      %v632 = vmax.f32 %v611, 0.0
      %v633 = vmax.f32 %v613, 0.0
      %v634 = vmax.f32 %v616, 0.0
      %v635 = vmax.f32 %v618, 0.0
      %v636 = vpack.c.bf16 %v621, %v620
      %v637 = vpack.c.bf16 %v623, %v622
      %v638 = vpack.c.bf16 %v625, %v624
      %v639 = vpack.c.bf16 %v627, %v626
      %v640 = vpack.c.bf16 %v629, %v628
      %v641 = vpack.c.bf16 %v631, %v630
      %v642 = vpack.c.bf16 %v633, %v632
      %v643 = vpack.c.bf16 %v635, %v634
      %v644 = vld [vmem:[%s6] sm:$0xf]
      %v645 = vld [vmem:[%s6 + $0x4] sm:$0xf]
      %v646 = vld [vmem:[%s6 + $0x8] sm:$0xf]
      %v647 = vld [vmem:[%s6 + $0xc] sm:$0xf]
      %v648 = vld [vmem:[%s6 + $0x10] sm:$0xf]
      %v649 = vld [vmem:[%s6 + $0x14] sm:$0xf]
      %v650 = vld [vmem:[%s6 + $0x18] sm:$0xf]
      %v651 = vld [vmem:[%s6 + $0x1c] sm:$0xf]
      %v652 = vld [vmem:[%s7] sm:$0x1]
      %v654 = vperm.slane %v652, 0
      %v664 = vunpack.c.l.b16 %v644
      %v665 = vunpack.c.l.b16 %v645
      %v666 = vunpack.c.l.b16 %v646
      %v667 = vunpack.c.l.b16 %v647
      %v668 = vunpack.c.l.b16 %v648
      %v669 = vunpack.c.l.b16 %v649
      %v670 = vunpack.c.l.b16 %v650
      %v671 = vunpack.c.l.b16 %v651
      %v672 = vpack.c.b16 %v665, %v664
      %v673 = vpack.c.b16 %v667, %v666
      %v674 = vpack.c.b16 %v669, %v668
      %v675 = vpack.c.b16 %v671, %v670
      %vm680 = vcmask 523264
      %v682 = vsel %vm680, %v636, 0
      %v685 = vsel %vm680, %v637, 0
      %v688 = vsel %vm680, %v638, 0
      %v691 = vsel %vm680, %v639, 0
      %v694 = vsel %vm680, %v640, 0
      %v697 = vsel %vm680, %v641, 0
      %v700 = vsel %vm680, %v642, 0
      %v703 = vsel %vm680, %v643, 0
      %705 = vmatpush.bf16.msra.mxu0 0
      %706 = vmatpush.bf16.msra.mxu0 0
      %707 = vmatpush.bf16.msra.mxu0 0
      %708 = vmatpush.bf16.msra.mxu0 0
      %709 = vmatpush.bf16.msra.mxu0 %v675
      %710 = vmatpush.bf16.msra.mxu0 %v674
      %711 = vmatpush.bf16.msra.mxu0 %v673
      %712 = vmatpush.bf16.msra.mxu0 %v672
      %713 = vmatmul.bf16.gmra.mxu0 %v682
      %v714 = vpop.f32.mrf.mxu0
      %v715 = vadd.f32 %v654, %v714
      %v716 = vpop.f32.mrf.mxu0
      %v717 = vadd.f32 %v654, %v716
      %718 = vmatmul.bf16.gmra.mxu0 %v685
      %v719 = vpop.f32.mrf.mxu0
      %v720 = vadd.f32 %v654, %v719
      %v721 = vpop.f32.mrf.mxu0
      %v722 = vadd.f32 %v654, %v721
      %723 = vmatmul.bf16.gmra.mxu0 %v688
      %v724 = vpop.f32.mrf.mxu0
      %v725 = vadd.f32 %v654, %v724
      %v726 = vpop.f32.mrf.mxu0
      %v727 = vadd.f32 %v654, %v726
      %728 = vmatmul.bf16.gmra.mxu0 %v691
      %v729 = vpop.f32.mrf.mxu0
      %v730 = vadd.f32 %v654, %v729
      %v731 = vpop.f32.mrf.mxu0
      %v732 = vadd.f32 %v654, %v731
      %733 = vmatmul.bf16.gmra.mxu0 %v694
      %v734 = vpop.f32.mrf.mxu0
      %v735 = vadd.f32 %v654, %v734
      %v736 = vpop.f32.mrf.mxu0
      %v737 = vadd.f32 %v654, %v736
      %738 = vmatmul.bf16.gmra.mxu0 %v697
      %v739 = vpop.f32.mrf.mxu0
      %v740 = vadd.f32 %v654, %v739
      %v741 = vpop.f32.mrf.mxu0
      %v742 = vadd.f32 %v654, %v741
      %743 = vmatmul.bf16.gmra.mxu0 %v700
      %v744 = vpop.f32.mrf.mxu0
      %v745 = vadd.f32 %v654, %v744
      %v746 = vpop.f32.mrf.mxu0
      %v747 = vadd.f32 %v654, %v746
      %748 = vmatmul.bf16.gmra.mxu0 %v703
      %v749 = vpop.f32.mrf.mxu0
      %v750 = vadd.f32 %v654, %v749
      %v751 = vpop.f32.mrf.mxu0
      %v752 = vadd.f32 %v654, %v751
      %753 = vdwg.mxu0
      %vm754 = vcmask 64512
      %v755 = vsel %vm754, %v715, -inf
      %756 = vmax.xlane.f32.xlu0 %v755
      %v757 = vpop.xlane.xlu0 %756
      %v758 = vsel %vm754, %v717, -inf
      %759 = vmax.xlane.f32.xlu0 %v758
      %v760 = vpop.xlane.xlu0 %759
      %v761 = vsel %vm754, %v720, -inf
      %762 = vmax.xlane.f32.xlu0 %v761
      %v763 = vpop.xlane.xlu0 %762
      %v764 = vsel %vm754, %v722, -inf
      %765 = vmax.xlane.f32.xlu0 %v764
      %v766 = vpop.xlane.xlu0 %765
      %v767 = vsel %vm754, %v725, -inf
      %768 = vmax.xlane.f32.xlu0 %v767
      %v769 = vpop.xlane.xlu0 %768
      %v770 = vsel %vm754, %v727, -inf
      %771 = vmax.xlane.f32.xlu0 %v770
      %v772 = vpop.xlane.xlu0 %771
      %v773 = vsel %vm754, %v730, -inf
      %774 = vmax.xlane.f32.xlu0 %v773
      %v775 = vpop.xlane.xlu0 %774
      %v776 = vsel %vm754, %v732, -inf
      %777 = vmax.xlane.f32.xlu0 %v776
      %v778 = vpop.xlane.xlu0 %777
      %v779 = vsel %vm754, %v735, -inf
      %780 = vmax.xlane.f32.xlu0 %v779
      %v781 = vpop.xlane.xlu0 %780
      %v782 = vsel %vm754, %v737, -inf
      %783 = vmax.xlane.f32.xlu0 %v782
      %v784 = vpop.xlane.xlu0 %783
      %v785 = vsel %vm754, %v740, -inf
      %786 = vmax.xlane.f32.xlu0 %v785
      %v787 = vpop.xlane.xlu0 %786
      %v788 = vsel %vm754, %v742, -inf
      %789 = vmax.xlane.f32.xlu0 %v788
      %v790 = vpop.xlane.xlu0 %789
      %v791 = vsel %vm754, %v745, -inf
      %792 = vmax.xlane.f32.xlu0 %v791
      %v793 = vpop.xlane.xlu0 %792
      %v794 = vsel %vm754, %v747, -inf
      %795 = vmax.xlane.f32.xlu0 %v794
      %v796 = vpop.xlane.xlu0 %795
      %v797 = vsel %vm754, %v750, -inf
      %798 = vmax.xlane.f32.xlu0 %v797
      %v799 = vpop.xlane.xlu0 %798
      %v800 = vsel %vm754, %v752, -inf
      %801 = vmax.xlane.f32.xlu0 %v800
      %v802 = vpop.xlane.xlu0 %801
      %v803 = vsub.f32 %v715, %v757
      %v804 = vsub.f32 %v717, %v760
      %v805 = vsub.f32 %v720, %v763
      %v806 = vsub.f32 %v722, %v766
      %v807 = vsub.f32 %v725, %v769
      %v808 = vsub.f32 %v727, %v772
      %v809 = vsub.f32 %v730, %v775
      %v810 = vsub.f32 %v732, %v778
      %v811 = vsub.f32 %v735, %v781
      %v812 = vsub.f32 %v737, %v784
      %v813 = vsub.f32 %v740, %v787
      %v814 = vsub.f32 %v742, %v790
      %v815 = vsub.f32 %v745, %v793
      %v816 = vsub.f32 %v747, %v796
      %v817 = vsub.f32 %v750, %v799
      %v818 = vsub.f32 %v752, %v802
      %v819 = vmul.f32 %v803, 1.442695
      %v820 = vpow.pop %v819
      %v821 = vmul.f32 %v804, 1.442695
      %v822 = vpow.pop %v821
      %v823 = vmul.f32 %v805, 1.442695
      %v824 = vpow.pop %v823
      %v825 = vmul.f32 %v806, 1.442695
      %v826 = vpow.pop %v825
      %v827 = vmul.f32 %v807, 1.442695
      %v828 = vpow.pop %v827
      %v829 = vmul.f32 %v808, 1.442695
      %v830 = vpow.pop %v829
      %v831 = vmul.f32 %v809, 1.442695
      %v832 = vpow.pop %v831
      %v833 = vmul.f32 %v810, 1.442695
      %v834 = vpow.pop %v833
      %v835 = vmul.f32 %v811, 1.442695
      %v836 = vpow.pop %v835
      %v837 = vmul.f32 %v812, 1.442695
      %v838 = vpow.pop %v837
      %v839 = vmul.f32 %v813, 1.442695
      %v840 = vpow.pop %v839
      %v841 = vmul.f32 %v814, 1.442695
      %v842 = vpow.pop %v841
      %v843 = vmul.f32 %v815, 1.442695
      %v844 = vpow.pop %v843
      %v845 = vmul.f32 %v816, 1.442695
      %v846 = vpow.pop %v845
      %v847 = vmul.f32 %v817, 1.442695
      %v848 = vpow.pop %v847
      %v849 = vmul.f32 %v818, 1.442695
      %v850 = vpow.pop %v849
      %v851 = vsel %vm754, %v820, 0.0
      %852 = vadd.xlane.f32.xlu0 %v851
      %v853 = vpop.xlane.xlu0 %852
      %v854 = vsel %vm754, %v822, 0.0
      %855 = vadd.xlane.f32.xlu0 %v854
      %v856 = vpop.xlane.xlu0 %855
      %v857 = vsel %vm754, %v824, 0.0
      %858 = vadd.xlane.f32.xlu0 %v857
      %v859 = vpop.xlane.xlu0 %858
      %v860 = vsel %vm754, %v826, 0.0
      %861 = vadd.xlane.f32.xlu0 %v860
      %v862 = vpop.xlane.xlu0 %861
      %v863 = vsel %vm754, %v828, 0.0
      %864 = vadd.xlane.f32.xlu0 %v863
      %v865 = vpop.xlane.xlu0 %864
      %v866 = vsel %vm754, %v830, 0.0
      %867 = vadd.xlane.f32.xlu0 %v866
      %v868 = vpop.xlane.xlu0 %867
      %v869 = vsel %vm754, %v832, 0.0
      %870 = vadd.xlane.f32.xlu0 %v869
      %v871 = vpop.xlane.xlu0 %870
      %v872 = vsel %vm754, %v834, 0.0
      %873 = vadd.xlane.f32.xlu0 %v872
      %v874 = vpop.xlane.xlu0 %873
      %v875 = vsel %vm754, %v836, 0.0
      %876 = vadd.xlane.f32.xlu0 %v875
      %v877 = vpop.xlane.xlu0 %876
      %v878 = vsel %vm754, %v838, 0.0
      %879 = vadd.xlane.f32.xlu0 %v878
      %v880 = vpop.xlane.xlu0 %879
      %v881 = vsel %vm754, %v840, 0.0
      %882 = vadd.xlane.f32.xlu0 %v881
      %v883 = vpop.xlane.xlu0 %882
      %v884 = vsel %vm754, %v842, 0.0
      %885 = vadd.xlane.f32.xlu0 %v884
      %v886 = vpop.xlane.xlu0 %885
      %v887 = vsel %vm754, %v844, 0.0
      %888 = vadd.xlane.f32.xlu0 %v887
      %v889 = vpop.xlane.xlu0 %888
      %v890 = vsel %vm754, %v846, 0.0
      %891 = vadd.xlane.f32.xlu0 %v890
      %v892 = vpop.xlane.xlu0 %891
      %v893 = vsel %vm754, %v848, 0.0
      %894 = vadd.xlane.f32.xlu0 %v893
      %v895 = vpop.xlane.xlu0 %894
      %v896 = vsel %vm754, %v850, 0.0
      %897 = vadd.xlane.f32.xlu0 %v896
      %v898 = vpop.xlane.xlu0 %897
      %v899 = vlog2.pop %v853
      %v900 = vmul.f32 %v899, 0.6931472
      %v901 = vlog2.pop %v856
      %v902 = vmul.f32 %v901, 0.6931472
      %v903 = vlog2.pop %v859
      %v904 = vmul.f32 %v903, 0.6931472
      %v905 = vlog2.pop %v862
      %v906 = vmul.f32 %v905, 0.6931472
      %v907 = vlog2.pop %v865
      %v908 = vmul.f32 %v907, 0.6931472
      %v909 = vlog2.pop %v868
      %v910 = vmul.f32 %v909, 0.6931472
      %v911 = vlog2.pop %v871
      %v912 = vmul.f32 %v911, 0.6931472
      %v913 = vlog2.pop %v874
      %v914 = vmul.f32 %v913, 0.6931472
      %v915 = vlog2.pop %v877
      %v916 = vmul.f32 %v915, 0.6931472
      %v917 = vlog2.pop %v880
      %v918 = vmul.f32 %v917, 0.6931472
      %v919 = vlog2.pop %v883
      %v920 = vmul.f32 %v919, 0.6931472
      %v921 = vlog2.pop %v886
      %v922 = vmul.f32 %v921, 0.6931472
      %v923 = vlog2.pop %v889
      %v924 = vmul.f32 %v923, 0.6931472
      %v925 = vlog2.pop %v892
      %v926 = vmul.f32 %v925, 0.6931472
      %v927 = vlog2.pop %v895
      %v928 = vmul.f32 %v927, 0.6931472
      %v929 = vlog2.pop %v898
      %v930 = vmul.f32 %v929, 0.6931472
      %v931 = vsub.f32 %v803, %v900
      %v932 = vsub.f32 %v804, %v902
      %v933 = vsub.f32 %v805, %v904
      %v934 = vsub.f32 %v806, %v906
      %v935 = vsub.f32 %v807, %v908
      %v936 = vsub.f32 %v808, %v910
      %v937 = vsub.f32 %v809, %v912
      %v938 = vsub.f32 %v810, %v914
      %v939 = vsub.f32 %v811, %v916
      %v940 = vsub.f32 %v812, %v918
      %v941 = vsub.f32 %v813, %v920
      %v942 = vsub.f32 %v814, %v922
      %v943 = vsub.f32 %v815, %v924
      %v944 = vsub.f32 %v816, %v926
      %v945 = vsub.f32 %v817, %v928
      %v946 = vsub.f32 %v818, %v930
      %v947 = vmul.f32 %v820, %v803
      %v948 = vmul.f32 %v822, %v804
      %v949 = vmul.f32 %v824, %v805
      %v950 = vmul.f32 %v826, %v806
      %v951 = vmul.f32 %v828, %v807
      %v952 = vmul.f32 %v830, %v808
      %v953 = vmul.f32 %v832, %v809
      %v954 = vmul.f32 %v834, %v810
      %v955 = vmul.f32 %v836, %v811
      %v956 = vmul.f32 %v838, %v812
      %v957 = vmul.f32 %v840, %v813
      %v958 = vmul.f32 %v842, %v814
      %v959 = vmul.f32 %v844, %v815
      %v960 = vmul.f32 %v846, %v816
      %v961 = vmul.f32 %v848, %v817
      %v962 = vmul.f32 %v850, %v818
      %v963 = vsel %vm754, %v947, 0.0
      %964 = vadd.xlane.f32.xlu0 %v963
      %v965 = vpop.xlane.xlu0 %964
      %v966 = vsel %vm754, %v948, 0.0
      %967 = vadd.xlane.f32.xlu0 %v966
      %v968 = vpop.xlane.xlu0 %967
      %v969 = vsel %vm754, %v949, 0.0
      %970 = vadd.xlane.f32.xlu0 %v969
      %v971 = vpop.xlane.xlu0 %970
      %v972 = vsel %vm754, %v950, 0.0
      %973 = vadd.xlane.f32.xlu0 %v972
      %v974 = vpop.xlane.xlu0 %973
      %v975 = vsel %vm754, %v951, 0.0
      %976 = vadd.xlane.f32.xlu0 %v975
      %v977 = vpop.xlane.xlu0 %976
      %v978 = vsel %vm754, %v952, 0.0
      %979 = vadd.xlane.f32.xlu0 %v978
      %v980 = vpop.xlane.xlu0 %979
      %v981 = vsel %vm754, %v953, 0.0
      %982 = vadd.xlane.f32.xlu0 %v981
      %v983 = vpop.xlane.xlu0 %982
      %v984 = vsel %vm754, %v954, 0.0
      %985 = vadd.xlane.f32.xlu0 %v984
      %v986 = vpop.xlane.xlu0 %985
      %v987 = vsel %vm754, %v955, 0.0
      %988 = vadd.xlane.f32.xlu0 %v987
      %v989 = vpop.xlane.xlu0 %988
      %v990 = vsel %vm754, %v956, 0.0
      %991 = vadd.xlane.f32.xlu0 %v990
      %v992 = vpop.xlane.xlu0 %991
      %v993 = vsel %vm754, %v957, 0.0
      %994 = vadd.xlane.f32.xlu0 %v993
      %v995 = vpop.xlane.xlu0 %994
      %v996 = vsel %vm754, %v958, 0.0
      %997 = vadd.xlane.f32.xlu0 %v996
      %v998 = vpop.xlane.xlu0 %997
      %v999 = vsel %vm754, %v959, 0.0
      %1000 = vadd.xlane.f32.xlu0 %v999
      %v1001 = vpop.xlane.xlu0 %1000
      %v1002 = vsel %vm754, %v960, 0.0
      %1003 = vadd.xlane.f32.xlu0 %v1002
      %v1004 = vpop.xlane.xlu0 %1003
      %v1005 = vsel %vm754, %v961, 0.0
      %1006 = vadd.xlane.f32.xlu0 %v1005
      %v1007 = vpop.xlane.xlu0 %1006
      %v1008 = vsel %vm754, %v962, 0.0
      %1009 = vadd.xlane.f32.xlu0 %v1008
      %v1010 = vpop.xlane.xlu0 %1009
      %v1011 = vrcp.pop %v853
      %v1012 = vmul.f32 %v853, %v1011
      %v1013 = vsub.f32 1.0, %v1012
      %v1014 = vmul.f32 %v1011, %v1013
      %v1015 = vadd.f32 %v1011, %v1014
      %vm1016 = vweird.f32 %v853
      %vm1017 = vweird.f32 %v1011
      %vm1018 = vmor %vm1016, %vm1017
      %v1019 = vsel %vm1018, %v1011, %v1015
      %v1020 = vand.u32 2147483647, %v853
      %vm1021 = vcmp.eq.f32.partialorder %v1020, 8.507059e+37
      %v1022 = vand.u32 %v853, 2147483648
      %v1023 = vor.u32 1.1754944e-38, %v1022
      %v1024 = vsel %vm1021, %v1023, %v1019
      %v1025 = vmul.f32 %v965, %v1024
      %v1026 = vrcp.pop %v856
      %v1027 = vmul.f32 %v856, %v1026
      %v1028 = vsub.f32 1.0, %v1027
      %v1029 = vmul.f32 %v1026, %v1028
      %v1030 = vadd.f32 %v1026, %v1029
      %vm1031 = vweird.f32 %v856
      %vm1032 = vweird.f32 %v1026
      %vm1033 = vmor %vm1031, %vm1032
      %v1034 = vsel %vm1033, %v1026, %v1030
      %v1035 = vand.u32 2147483647, %v856
      %vm1036 = vcmp.eq.f32.partialorder %v1035, 8.507059e+37
      %v1037 = vand.u32 %v856, 2147483648
      %v1038 = vor.u32 1.1754944e-38, %v1037
      %v1039 = vsel %vm1036, %v1038, %v1034
      %v1040 = vmul.f32 %v968, %v1039
      %v1041 = vrcp.pop %v859
      %v1042 = vmul.f32 %v859, %v1041
      %v1043 = vsub.f32 1.0, %v1042
      %v1044 = vmul.f32 %v1041, %v1043
      %v1045 = vadd.f32 %v1041, %v1044
      %vm1046 = vweird.f32 %v859
      %vm1047 = vweird.f32 %v1041
      %vm1048 = vmor %vm1046, %vm1047
      %v1049 = vsel %vm1048, %v1041, %v1045
      %v1050 = vand.u32 2147483647, %v859
      %vm1051 = vcmp.eq.f32.partialorder %v1050, 8.507059e+37
      %v1052 = vand.u32 %v859, 2147483648
      %v1053 = vor.u32 1.1754944e-38, %v1052
      %v1054 = vsel %vm1051, %v1053, %v1049
      %v1055 = vmul.f32 %v971, %v1054
      %v1056 = vrcp.pop %v862
      %v1057 = vmul.f32 %v862, %v1056
      %v1058 = vsub.f32 1.0, %v1057
      %v1059 = vmul.f32 %v1056, %v1058
      %v1060 = vadd.f32 %v1056, %v1059
      %vm1061 = vweird.f32 %v862
      %vm1062 = vweird.f32 %v1056
      %vm1063 = vmor %vm1061, %vm1062
      %v1064 = vsel %vm1063, %v1056, %v1060
      %v1065 = vand.u32 2147483647, %v862
      %vm1066 = vcmp.eq.f32.partialorder %v1065, 8.507059e+37
      %v1067 = vand.u32 %v862, 2147483648
      %v1068 = vor.u32 1.1754944e-38, %v1067
      %v1069 = vsel %vm1066, %v1068, %v1064
      %v1070 = vmul.f32 %v974, %v1069
      %v1071 = vrcp.pop %v865
      %v1072 = vmul.f32 %v865, %v1071
      %v1073 = vsub.f32 1.0, %v1072
      %v1074 = vmul.f32 %v1071, %v1073
      %v1075 = vadd.f32 %v1071, %v1074
      %vm1076 = vweird.f32 %v865
      %vm1077 = vweird.f32 %v1071
      %vm1078 = vmor %vm1076, %vm1077
      %v1079 = vsel %vm1078, %v1071, %v1075
      %v1080 = vand.u32 2147483647, %v865
      %vm1081 = vcmp.eq.f32.partialorder %v1080, 8.507059e+37
      %v1082 = vand.u32 %v865, 2147483648
      %v1083 = vor.u32 1.1754944e-38, %v1082
      %v1084 = vsel %vm1081, %v1083, %v1079
      %v1085 = vmul.f32 %v977, %v1084
      %v1086 = vrcp.pop %v868
      %v1087 = vmul.f32 %v868, %v1086
      %v1088 = vsub.f32 1.0, %v1087
      %v1089 = vmul.f32 %v1086, %v1088
      %v1090 = vadd.f32 %v1086, %v1089
      %vm1091 = vweird.f32 %v868
      %vm1092 = vweird.f32 %v1086
      %vm1093 = vmor %vm1091, %vm1092
      %v1094 = vsel %vm1093, %v1086, %v1090
      %v1095 = vand.u32 2147483647, %v868
      %vm1096 = vcmp.eq.f32.partialorder %v1095, 8.507059e+37
      %v1097 = vand.u32 %v868, 2147483648
      %v1098 = vor.u32 1.1754944e-38, %v1097
      %v1099 = vsel %vm1096, %v1098, %v1094
      %v1100 = vmul.f32 %v980, %v1099
      %v1101 = vrcp.pop %v871
      %v1102 = vmul.f32 %v871, %v1101
      %v1103 = vsub.f32 1.0, %v1102
      %v1104 = vmul.f32 %v1101, %v1103
      %v1105 = vadd.f32 %v1101, %v1104
      %vm1106 = vweird.f32 %v871
      %vm1107 = vweird.f32 %v1101
      %vm1108 = vmor %vm1106, %vm1107
      %v1109 = vsel %vm1108, %v1101, %v1105
      %v1110 = vand.u32 2147483647, %v871
      %vm1111 = vcmp.eq.f32.partialorder %v1110, 8.507059e+37
      %v1112 = vand.u32 %v871, 2147483648
      %v1113 = vor.u32 1.1754944e-38, %v1112
      %v1114 = vsel %vm1111, %v1113, %v1109
      %v1115 = vmul.f32 %v983, %v1114
      %v1116 = vrcp.pop %v874
      %v1117 = vmul.f32 %v874, %v1116
      %v1118 = vsub.f32 1.0, %v1117
      %v1119 = vmul.f32 %v1116, %v1118
      %v1120 = vadd.f32 %v1116, %v1119
      %vm1121 = vweird.f32 %v874
      %vm1122 = vweird.f32 %v1116
      %vm1123 = vmor %vm1121, %vm1122
      %v1124 = vsel %vm1123, %v1116, %v1120
      %v1125 = vand.u32 2147483647, %v874
      %vm1126 = vcmp.eq.f32.partialorder %v1125, 8.507059e+37
      %v1127 = vand.u32 %v874, 2147483648
      %v1128 = vor.u32 1.1754944e-38, %v1127
      %v1129 = vsel %vm1126, %v1128, %v1124
      %v1130 = vmul.f32 %v986, %v1129
      %v1131 = vrcp.pop %v877
      %v1132 = vmul.f32 %v877, %v1131
      %v1133 = vsub.f32 1.0, %v1132
      %v1134 = vmul.f32 %v1131, %v1133
      %v1135 = vadd.f32 %v1131, %v1134
      %vm1136 = vweird.f32 %v877
      %vm1137 = vweird.f32 %v1131
      %vm1138 = vmor %vm1136, %vm1137
      %v1139 = vsel %vm1138, %v1131, %v1135
      %v1140 = vand.u32 2147483647, %v877
      %vm1141 = vcmp.eq.f32.partialorder %v1140, 8.507059e+37
      %v1142 = vand.u32 %v877, 2147483648
      %v1143 = vor.u32 1.1754944e-38, %v1142
      %v1144 = vsel %vm1141, %v1143, %v1139
      %v1145 = vmul.f32 %v989, %v1144
      %v1146 = vrcp.pop %v880
      %v1147 = vmul.f32 %v880, %v1146
      %v1148 = vsub.f32 1.0, %v1147
      %v1149 = vmul.f32 %v1146, %v1148
      %v1150 = vadd.f32 %v1146, %v1149
      %vm1151 = vweird.f32 %v880
      %vm1152 = vweird.f32 %v1146
      %vm1153 = vmor %vm1151, %vm1152
      %v1154 = vsel %vm1153, %v1146, %v1150
      %v1155 = vand.u32 2147483647, %v880
      %vm1156 = vcmp.eq.f32.partialorder %v1155, 8.507059e+37
      %v1157 = vand.u32 %v880, 2147483648
      %v1158 = vor.u32 1.1754944e-38, %v1157
      %v1159 = vsel %vm1156, %v1158, %v1154
      %v1160 = vmul.f32 %v992, %v1159
      %v1161 = vrcp.pop %v883
      %v1162 = vmul.f32 %v883, %v1161
      %v1163 = vsub.f32 1.0, %v1162
      %v1164 = vmul.f32 %v1161, %v1163
      %v1165 = vadd.f32 %v1161, %v1164
      %vm1166 = vweird.f32 %v883
      %vm1167 = vweird.f32 %v1161
      %vm1168 = vmor %vm1166, %vm1167
      %v1169 = vsel %vm1168, %v1161, %v1165
      %v1170 = vand.u32 2147483647, %v883
      %vm1171 = vcmp.eq.f32.partialorder %v1170, 8.507059e+37
      %v1172 = vand.u32 %v883, 2147483648
      %v1173 = vor.u32 1.1754944e-38, %v1172
      %v1174 = vsel %vm1171, %v1173, %v1169
      %v1175 = vmul.f32 %v995, %v1174
      %v1176 = vrcp.pop %v886
      %v1177 = vmul.f32 %v886, %v1176
      %v1178 = vsub.f32 1.0, %v1177
      %v1179 = vmul.f32 %v1176, %v1178
      %v1180 = vadd.f32 %v1176, %v1179
      %vm1181 = vweird.f32 %v886
      %vm1182 = vweird.f32 %v1176
      %vm1183 = vmor %vm1181, %vm1182
      %v1184 = vsel %vm1183, %v1176, %v1180
      %v1185 = vand.u32 2147483647, %v886
      %vm1186 = vcmp.eq.f32.partialorder %v1185, 8.507059e+37
      %v1187 = vand.u32 %v886, 2147483648
      %v1188 = vor.u32 1.1754944e-38, %v1187
      %v1189 = vsel %vm1186, %v1188, %v1184
      %v1190 = vmul.f32 %v998, %v1189
      %v1191 = vrcp.pop %v889
      %v1192 = vmul.f32 %v889, %v1191
      %v1193 = vsub.f32 1.0, %v1192
      %v1194 = vmul.f32 %v1191, %v1193
      %v1195 = vadd.f32 %v1191, %v1194
      %vm1196 = vweird.f32 %v889
      %vm1197 = vweird.f32 %v1191
      %vm1198 = vmor %vm1196, %vm1197
      %v1199 = vsel %vm1198, %v1191, %v1195
      %v1200 = vand.u32 2147483647, %v889
      %vm1201 = vcmp.eq.f32.partialorder %v1200, 8.507059e+37
      %v1202 = vand.u32 %v889, 2147483648
      %v1203 = vor.u32 1.1754944e-38, %v1202
      %v1204 = vsel %vm1201, %v1203, %v1199
      %v1205 = vmul.f32 %v1001, %v1204
      %v1206 = vrcp.pop %v892
      %v1207 = vmul.f32 %v892, %v1206
      %v1208 = vsub.f32 1.0, %v1207
      %v1209 = vmul.f32 %v1206, %v1208
      %v1210 = vadd.f32 %v1206, %v1209
      %vm1211 = vweird.f32 %v892
      %vm1212 = vweird.f32 %v1206
      %vm1213 = vmor %vm1211, %vm1212
      %v1214 = vsel %vm1213, %v1206, %v1210
      %v1215 = vand.u32 2147483647, %v892
      %vm1216 = vcmp.eq.f32.partialorder %v1215, 8.507059e+37
      %v1217 = vand.u32 %v892, 2147483648
      %v1218 = vor.u32 1.1754944e-38, %v1217
      %v1219 = vsel %vm1216, %v1218, %v1214
      %v1220 = vmul.f32 %v1004, %v1219
      %v1221 = vrcp.pop %v895
      %v1222 = vmul.f32 %v895, %v1221
      %v1223 = vsub.f32 1.0, %v1222
      %v1224 = vmul.f32 %v1221, %v1223
      %v1225 = vadd.f32 %v1221, %v1224
      %vm1226 = vweird.f32 %v895
      %vm1227 = vweird.f32 %v1221
      %vm1228 = vmor %vm1226, %vm1227
      %v1229 = vsel %vm1228, %v1221, %v1225
      %v1230 = vand.u32 2147483647, %v895
      %vm1231 = vcmp.eq.f32.partialorder %v1230, 8.507059e+37
      %v1232 = vand.u32 %v895, 2147483648
      %v1233 = vor.u32 1.1754944e-38, %v1232
      %v1234 = vsel %vm1231, %v1233, %v1229
      %v1235 = vmul.f32 %v1007, %v1234
      %v1236 = vrcp.pop %v898
      %v1237 = vmul.f32 %v898, %v1236
      %v1238 = vsub.f32 1.0, %v1237
      %v1239 = vmul.f32 %v1236, %v1238
      %v1240 = vadd.f32 %v1236, %v1239
      %vm1241 = vweird.f32 %v898
      %vm1242 = vweird.f32 %v1236
      %vm1243 = vmor %vm1241, %vm1242
      %v1244 = vsel %vm1243, %v1236, %v1240
      %v1245 = vand.u32 2147483647, %v898
      %vm1246 = vcmp.eq.f32.partialorder %v1245, 8.507059e+37
      %v1247 = vand.u32 %v898, 2147483648
      %v1248 = vor.u32 1.1754944e-38, %v1247
      %v1249 = vsel %vm1246, %v1248, %v1244
      %v1250 = vmul.f32 %v1010, %v1249
      %v1251 = vsub.f32 %v900, %v1025
      %v1252 = vsub.f32 %v902, %v1040
      %v1253 = vsub.f32 %v904, %v1055
      %v1254 = vsub.f32 %v906, %v1070
      %v1255 = vsub.f32 %v908, %v1085
      %v1256 = vsub.f32 %v910, %v1100
      %v1257 = vsub.f32 %v912, %v1115
      %v1258 = vsub.f32 %v914, %v1130
      %v1259 = vsub.f32 %v916, %v1145
      %v1260 = vsub.f32 %v918, %v1160
      %v1261 = vsub.f32 %v920, %v1175
      %v1262 = vsub.f32 %v922, %v1190
      %v1263 = vsub.f32 %v924, %v1205
      %v1264 = vsub.f32 %v926, %v1220
      %v1265 = vsub.f32 %v928, %v1235
      %v1266 = vsub.f32 %v930, %v1250
      %v1267 = vmax.f32 %v1251, 0.0
      %v1268 = vmax.f32 %v1252, 0.0
      %v1269 = vmax.f32 %v1253, 0.0
      %v1270 = vmax.f32 %v1254, 0.0
      %v1271 = vmax.f32 %v1255, 0.0
      %v1272 = vmax.f32 %v1256, 0.0
      %v1273 = vmax.f32 %v1257, 0.0
      %v1274 = vmax.f32 %v1258, 0.0
      %v1275 = vmax.f32 %v1259, 0.0
      %v1276 = vmax.f32 %v1260, 0.0
      %v1277 = vmax.f32 %v1261, 0.0
      %v1278 = vmax.f32 %v1262, 0.0
      %v1279 = vmax.f32 %v1263, 0.0
      %v1280 = vmax.f32 %v1264, 0.0
      %v1281 = vmax.f32 %v1265, 0.0
      %v1282 = vmax.f32 %v1266, 0.0
      %v1283 = vld [vmem:[%s322] sm:$0xff]
      %v1284 = vld [vmem:[%s322 + $0x8] sm:$0xff]
      %v1285 = vld [vmem:[%s322 + $0x10] sm:$0xff]
      %v1286 = vld [vmem:[%s322 + $0x18] sm:$0xff]
      %v1287 = vld [vmem:[%s322 + $0x20] sm:$0xff]
      %v1288 = vld [vmem:[%s322 + $0x28] sm:$0xff]
      %v1289 = vld [vmem:[%s322 + $0x30] sm:$0xff]
      %v1290 = vld [vmem:[%s322 + $0x38] sm:$0xff]
      %v1291 = vld [vmem:[%s322 + $0x40] sm:$0xff]
      %v1292 = vld [vmem:[%s322 + $0x48] sm:$0xff]
      %v1293 = vld [vmem:[%s322 + $0x50] sm:$0xff]
      %v1294 = vld [vmem:[%s322 + $0x58] sm:$0xff]
      %v1295 = vld [vmem:[%s322 + $0x60] sm:$0xff]
      %v1296 = vld [vmem:[%s322 + $0x68] sm:$0xff]
      %v1297 = vld [vmem:[%s322 + $0x70] sm:$0xff]
      %v1298 = vld [vmem:[%s322 + $0x78] sm:$0xff]
      %v1299 = vadd.f32 %v715, %v1283
      %v1300 = vadd.f32 %v717, %v1284
      %v1301 = vadd.f32 %v720, %v1285
      %v1302 = vadd.f32 %v722, %v1286
      %v1303 = vadd.f32 %v725, %v1287
      %v1304 = vadd.f32 %v727, %v1288
      %v1305 = vadd.f32 %v730, %v1289
      %v1306 = vadd.f32 %v732, %v1290
      %v1307 = vadd.f32 %v735, %v1291
      %v1308 = vadd.f32 %v737, %v1292
      %v1309 = vadd.f32 %v740, %v1293
      %v1310 = vadd.f32 %v742, %v1294
      %v1311 = vadd.f32 %v745, %v1295
      %v1312 = vadd.f32 %v747, %v1296
      %v1313 = vadd.f32 %v750, %v1297
      %v1314 = vadd.f32 %v752, %v1298
      %v1315 = vsel %vm754, %v1299, -inf
      %1316 = vmax.xlane.f32.xlu0 %v1315
      %v1317 = vpop.xlane.xlu0 %1316
      %v1318 = vsel %vm754, %v1300, -inf
      %1319 = vmax.xlane.f32.xlu0 %v1318
      %v1320 = vpop.xlane.xlu0 %1319
      %v1321 = vsel %vm754, %v1301, -inf
      %1322 = vmax.xlane.f32.xlu0 %v1321
      %v1323 = vpop.xlane.xlu0 %1322
      %v1324 = vsel %vm754, %v1302, -inf
      %1325 = vmax.xlane.f32.xlu0 %v1324
      %v1326 = vpop.xlane.xlu0 %1325
      %v1327 = vsel %vm754, %v1303, -inf
      %1328 = vmax.xlane.f32.xlu0 %v1327
      %v1329 = vpop.xlane.xlu0 %1328
      %v1330 = vsel %vm754, %v1304, -inf
      %1331 = vmax.xlane.f32.xlu0 %v1330
      %v1332 = vpop.xlane.xlu0 %1331
      %v1333 = vsel %vm754, %v1305, -inf
      %1334 = vmax.xlane.f32.xlu0 %v1333
      %v1335 = vpop.xlane.xlu0 %1334
      %v1336 = vsel %vm754, %v1306, -inf
      %1337 = vmax.xlane.f32.xlu0 %v1336
      %v1338 = vpop.xlane.xlu0 %1337
      %v1339 = vsel %vm754, %v1307, -inf
      %1340 = vmax.xlane.f32.xlu0 %v1339
      %v1341 = vpop.xlane.xlu0 %1340
      %v1342 = vsel %vm754, %v1308, -inf
      %1343 = vmax.xlane.f32.xlu0 %v1342
      %v1344 = vpop.xlane.xlu0 %1343
      %v1345 = vsel %vm754, %v1309, -inf
      %1346 = vmax.xlane.f32.xlu0 %v1345
      %v1347 = vpop.xlane.xlu0 %1346
      %v1348 = vsel %vm754, %v1310, -inf
      %1349 = vmax.xlane.f32.xlu0 %v1348
      %v1350 = vpop.xlane.xlu0 %1349
      %v1351 = vsel %vm754, %v1311, -inf
      %1352 = vmax.xlane.f32.xlu0 %v1351
      %v1353 = vpop.xlane.xlu0 %1352
      %v1354 = vsel %vm754, %v1312, -inf
      %1355 = vmax.xlane.f32.xlu0 %v1354
      %v1356 = vpop.xlane.xlu0 %1355
      %v1357 = vsel %vm754, %v1313, -inf
      %1358 = vmax.xlane.f32.xlu0 %v1357
      %v1359 = vpop.xlane.xlu0 %1358
      %v1360 = vsel %vm754, %v1314, -inf
      %1361 = vmax.xlane.f32.xlu0 %v1360
      %v1362 = vpop.xlane.xlu0 %1361
      %v1363 = vlaneseq
      %v1364 = vand.u32 %v1363, 127
      %vm1365 = vcmp.eq.f32.partialorder %v1299, %v1317
      %vm1366 = vcmp.eq.f32.partialorder %v1300, %v1320
      %vm1367 = vcmp.eq.f32.partialorder %v1301, %v1323
      %vm1368 = vcmp.eq.f32.partialorder %v1302, %v1326
      %vm1369 = vcmp.eq.f32.partialorder %v1303, %v1329
      %vm1370 = vcmp.eq.f32.partialorder %v1304, %v1332
      %vm1371 = vcmp.eq.f32.partialorder %v1305, %v1335
      %vm1372 = vcmp.eq.f32.partialorder %v1306, %v1338
      %vm1373 = vcmp.eq.f32.partialorder %v1307, %v1341
      %vm1374 = vcmp.eq.f32.partialorder %v1308, %v1344
      %vm1375 = vcmp.eq.f32.partialorder %v1309, %v1347
      %vm1376 = vcmp.eq.f32.partialorder %v1310, %v1350
      %vm1377 = vcmp.eq.f32.partialorder %v1311, %v1353
      %vm1378 = vcmp.eq.f32.partialorder %v1312, %v1356
      %vm1379 = vcmp.eq.f32.partialorder %v1313, %v1359
      %vm1380 = vcmp.eq.f32.partialorder %v1314, %v1362
      %v1381 = vsel %vm1365, %v1364, 8
      %v1382 = vsel %vm1366, %v1364, 8
      %v1383 = vsel %vm1367, %v1364, 8
      %v1384 = vsel %vm1368, %v1364, 8
      %v1385 = vsel %vm1369, %v1364, 8
      %v1386 = vsel %vm1370, %v1364, 8
      %v1387 = vsel %vm1371, %v1364, 8
      %v1388 = vsel %vm1372, %v1364, 8
      %v1389 = vsel %vm1373, %v1364, 8
      %v1390 = vsel %vm1374, %v1364, 8
      %v1391 = vsel %vm1375, %v1364, 8
      %v1392 = vsel %vm1376, %v1364, 8
      %v1393 = vsel %vm1377, %v1364, 8
      %v1394 = vsel %vm1378, %v1364, 8
      %v1395 = vsel %vm1379, %v1364, 8
      %v1396 = vsel %vm1380, %v1364, 8
      %v1397 = vsel %vm754, %v1381, 2147483647
      %v1398 = vand.u32 %v1397, 65535
      %v1399 = vshra.s32 %v1397, 16
      %v1400 = vcvt.s32.f32 %v1398
      %v1401 = vcvt.s32.f32 %v1399
      %1402 = vmin.xlane.f32.xlu0 %v1401
      %v1403 = vpop.xlane.xlu0 %1402
      %vm1404 = vcmp.eq.f32.partialorder %v1401, %v1403
      %v1405 = vsel %vm1404, %v1400, inf
      %1406 = vmin.xlane.f32.xlu0 %v1405
      %v1407 = vpop.xlane.xlu0 %1406
      %v1408 = vcvt.f32.s32 %v1407
      %v1409 = vcvt.f32.s32 %v1403
      %v1410 = vshll.u32 %v1409, 16
      %v1411 = vadd.s32 %v1410, %v1408
      %v1412 = vsel %vm754, %v1382, 2147483647
      %v1413 = vand.u32 %v1412, 65535
      %v1414 = vshra.s32 %v1412, 16
      %v1415 = vcvt.s32.f32 %v1413
      %v1416 = vcvt.s32.f32 %v1414
      %1417 = vmin.xlane.f32.xlu0 %v1416
      %v1418 = vpop.xlane.xlu0 %1417
      %vm1419 = vcmp.eq.f32.partialorder %v1416, %v1418
      %v1420 = vsel %vm1419, %v1415, inf
      %1421 = vmin.xlane.f32.xlu0 %v1420
      %v1422 = vpop.xlane.xlu0 %1421
      %v1423 = vcvt.f32.s32 %v1422
      %v1424 = vcvt.f32.s32 %v1418
      %v1425 = vshll.u32 %v1424, 16
      %v1426 = vadd.s32 %v1425, %v1423
      %v1427 = vsel %vm754, %v1383, 2147483647
      %v1428 = vand.u32 %v1427, 65535
      %v1429 = vshra.s32 %v1427, 16
      %v1430 = vcvt.s32.f32 %v1428
      %v1431 = vcvt.s32.f32 %v1429
      %1432 = vmin.xlane.f32.xlu0 %v1431
      %v1433 = vpop.xlane.xlu0 %1432
      %vm1434 = vcmp.eq.f32.partialorder %v1431, %v1433
      %v1435 = vsel %vm1434, %v1430, inf
      %1436 = vmin.xlane.f32.xlu0 %v1435
      %v1437 = vpop.xlane.xlu0 %1436
      %v1438 = vcvt.f32.s32 %v1437
      %v1439 = vcvt.f32.s32 %v1433
      %v1440 = vshll.u32 %v1439, 16
      %v1441 = vadd.s32 %v1440, %v1438
      %v1442 = vsel %vm754, %v1384, 2147483647
      %v1443 = vand.u32 %v1442, 65535
      %v1444 = vshra.s32 %v1442, 16
      %v1445 = vcvt.s32.f32 %v1443
      %v1446 = vcvt.s32.f32 %v1444
      %1447 = vmin.xlane.f32.xlu0 %v1446
      %v1448 = vpop.xlane.xlu0 %1447
      %vm1449 = vcmp.eq.f32.partialorder %v1446, %v1448
      %v1450 = vsel %vm1449, %v1445, inf
      %1451 = vmin.xlane.f32.xlu0 %v1450
      %v1452 = vpop.xlane.xlu0 %1451
      %v1453 = vcvt.f32.s32 %v1452
      %v1454 = vcvt.f32.s32 %v1448
      %v1455 = vshll.u32 %v1454, 16
      %v1456 = vadd.s32 %v1455, %v1453
      %v1457 = vsel %vm754, %v1385, 2147483647
      %v1458 = vand.u32 %v1457, 65535
      %v1459 = vshra.s32 %v1457, 16
      %v1460 = vcvt.s32.f32 %v1458
      %v1461 = vcvt.s32.f32 %v1459
      %1462 = vmin.xlane.f32.xlu0 %v1461
      %v1463 = vpop.xlane.xlu0 %1462
      %vm1464 = vcmp.eq.f32.partialorder %v1461, %v1463
      %v1465 = vsel %vm1464, %v1460, inf
      %1466 = vmin.xlane.f32.xlu0 %v1465
      %v1467 = vpop.xlane.xlu0 %1466
      %v1468 = vcvt.f32.s32 %v1467
      %v1469 = vcvt.f32.s32 %v1463
      %v1470 = vshll.u32 %v1469, 16
      %v1471 = vadd.s32 %v1470, %v1468
      %v1472 = vsel %vm754, %v1386, 2147483647
      %v1473 = vand.u32 %v1472, 65535
      %v1474 = vshra.s32 %v1472, 16
      %v1475 = vcvt.s32.f32 %v1473
      %v1476 = vcvt.s32.f32 %v1474
      %1477 = vmin.xlane.f32.xlu0 %v1476
      %v1478 = vpop.xlane.xlu0 %1477
      %vm1479 = vcmp.eq.f32.partialorder %v1476, %v1478
      %v1480 = vsel %vm1479, %v1475, inf
      %1481 = vmin.xlane.f32.xlu0 %v1480
      %v1482 = vpop.xlane.xlu0 %1481
      %v1483 = vcvt.f32.s32 %v1482
      %v1484 = vcvt.f32.s32 %v1478
      %v1485 = vshll.u32 %v1484, 16
      %v1486 = vadd.s32 %v1485, %v1483
      %v1487 = vsel %vm754, %v1387, 2147483647
      %v1488 = vand.u32 %v1487, 65535
      %v1489 = vshra.s32 %v1487, 16
      %v1490 = vcvt.s32.f32 %v1488
      %v1491 = vcvt.s32.f32 %v1489
      %1492 = vmin.xlane.f32.xlu0 %v1491
      %v1493 = vpop.xlane.xlu0 %1492
      %vm1494 = vcmp.eq.f32.partialorder %v1491, %v1493
      %v1495 = vsel %vm1494, %v1490, inf
      %1496 = vmin.xlane.f32.xlu0 %v1495
      %v1497 = vpop.xlane.xlu0 %1496
      %v1498 = vcvt.f32.s32 %v1497
      %v1499 = vcvt.f32.s32 %v1493
      %v1500 = vshll.u32 %v1499, 16
      %v1501 = vadd.s32 %v1500, %v1498
      %v1502 = vsel %vm754, %v1388, 2147483647
      %v1503 = vand.u32 %v1502, 65535
      %v1504 = vshra.s32 %v1502, 16
      %v1505 = vcvt.s32.f32 %v1503
      %v1506 = vcvt.s32.f32 %v1504
      %1507 = vmin.xlane.f32.xlu0 %v1506
      %v1508 = vpop.xlane.xlu0 %1507
      %vm1509 = vcmp.eq.f32.partialorder %v1506, %v1508
      %v1510 = vsel %vm1509, %v1505, inf
      %1511 = vmin.xlane.f32.xlu0 %v1510
      %v1512 = vpop.xlane.xlu0 %1511
      %v1513 = vcvt.f32.s32 %v1512
      %v1514 = vcvt.f32.s32 %v1508
      %v1515 = vshll.u32 %v1514, 16
      %v1516 = vadd.s32 %v1515, %v1513
      %v1517 = vsel %vm754, %v1389, 2147483647
      %v1518 = vand.u32 %v1517, 65535
      %v1519 = vshra.s32 %v1517, 16
      %v1520 = vcvt.s32.f32 %v1518
      %v1521 = vcvt.s32.f32 %v1519
      %1522 = vmin.xlane.f32.xlu0 %v1521
      %v1523 = vpop.xlane.xlu0 %1522
      %vm1524 = vcmp.eq.f32.partialorder %v1521, %v1523
      %v1525 = vsel %vm1524, %v1520, inf
      %1526 = vmin.xlane.f32.xlu0 %v1525
      %v1527 = vpop.xlane.xlu0 %1526
      %v1528 = vcvt.f32.s32 %v1527
      %v1529 = vcvt.f32.s32 %v1523
      %v1530 = vshll.u32 %v1529, 16
      %v1531 = vadd.s32 %v1530, %v1528
      %v1532 = vsel %vm754, %v1390, 2147483647
      %v1533 = vand.u32 %v1532, 65535
      %v1534 = vshra.s32 %v1532, 16
      %v1535 = vcvt.s32.f32 %v1533
      %v1536 = vcvt.s32.f32 %v1534
      %1537 = vmin.xlane.f32.xlu0 %v1536
      %v1538 = vpop.xlane.xlu0 %1537
      %vm1539 = vcmp.eq.f32.partialorder %v1536, %v1538
      %v1540 = vsel %vm1539, %v1535, inf
      %1541 = vmin.xlane.f32.xlu0 %v1540
      %v1542 = vpop.xlane.xlu0 %1541
      %v1543 = vcvt.f32.s32 %v1542
      %v1544 = vcvt.f32.s32 %v1538
      %v1545 = vshll.u32 %v1544, 16
      %v1546 = vadd.s32 %v1545, %v1543
      %v1547 = vsel %vm754, %v1391, 2147483647
      %v1548 = vand.u32 %v1547, 65535
      %v1549 = vshra.s32 %v1547, 16
      %v1550 = vcvt.s32.f32 %v1548
      %v1551 = vcvt.s32.f32 %v1549
      %1552 = vmin.xlane.f32.xlu0 %v1551
      %v1553 = vpop.xlane.xlu0 %1552
      %vm1554 = vcmp.eq.f32.partialorder %v1551, %v1553
      %v1555 = vsel %vm1554, %v1550, inf
      %1556 = vmin.xlane.f32.xlu0 %v1555
      %v1557 = vpop.xlane.xlu0 %1556
      %v1558 = vcvt.f32.s32 %v1557
      %v1559 = vcvt.f32.s32 %v1553
      %v1560 = vshll.u32 %v1559, 16
      %v1561 = vadd.s32 %v1560, %v1558
      %v1562 = vsel %vm754, %v1392, 2147483647
      %v1563 = vand.u32 %v1562, 65535
      %v1564 = vshra.s32 %v1562, 16
      %v1565 = vcvt.s32.f32 %v1563
      %v1566 = vcvt.s32.f32 %v1564
      %1567 = vmin.xlane.f32.xlu0 %v1566
      %v1568 = vpop.xlane.xlu0 %1567
      %vm1569 = vcmp.eq.f32.partialorder %v1566, %v1568
      %v1570 = vsel %vm1569, %v1565, inf
      %1571 = vmin.xlane.f32.xlu0 %v1570
      %v1572 = vpop.xlane.xlu0 %1571
      %v1573 = vcvt.f32.s32 %v1572
      %v1574 = vcvt.f32.s32 %v1568
      %v1575 = vshll.u32 %v1574, 16
      %v1576 = vadd.s32 %v1575, %v1573
      %v1577 = vsel %vm754, %v1393, 2147483647
      %v1578 = vand.u32 %v1577, 65535
      %v1579 = vshra.s32 %v1577, 16
      %v1580 = vcvt.s32.f32 %v1578
      %v1581 = vcvt.s32.f32 %v1579
      %1582 = vmin.xlane.f32.xlu0 %v1581
      %v1583 = vpop.xlane.xlu0 %1582
      %vm1584 = vcmp.eq.f32.partialorder %v1581, %v1583
      %v1585 = vsel %vm1584, %v1580, inf
      %1586 = vmin.xlane.f32.xlu0 %v1585
      %v1587 = vpop.xlane.xlu0 %1586
      %v1588 = vcvt.f32.s32 %v1587
      %v1589 = vcvt.f32.s32 %v1583
      %v1590 = vshll.u32 %v1589, 16
      %v1591 = vadd.s32 %v1590, %v1588
      %v1592 = vsel %vm754, %v1394, 2147483647
      %v1593 = vand.u32 %v1592, 65535
      %v1594 = vshra.s32 %v1592, 16
      %v1595 = vcvt.s32.f32 %v1593
      %v1596 = vcvt.s32.f32 %v1594
      %1597 = vmin.xlane.f32.xlu0 %v1596
      %v1598 = vpop.xlane.xlu0 %1597
      %vm1599 = vcmp.eq.f32.partialorder %v1596, %v1598
      %v1600 = vsel %vm1599, %v1595, inf
      %1601 = vmin.xlane.f32.xlu0 %v1600
      %v1602 = vpop.xlane.xlu0 %1601
      %v1603 = vcvt.f32.s32 %v1602
      %v1604 = vcvt.f32.s32 %v1598
      %v1605 = vshll.u32 %v1604, 16
      %v1606 = vadd.s32 %v1605, %v1603
      %v1607 = vsel %vm754, %v1395, 2147483647
      %v1608 = vand.u32 %v1607, 65535
      %v1609 = vshra.s32 %v1607, 16
      %v1610 = vcvt.s32.f32 %v1608
      %v1611 = vcvt.s32.f32 %v1609
      %1612 = vmin.xlane.f32.xlu0 %v1611
      %v1613 = vpop.xlane.xlu0 %1612
      %vm1614 = vcmp.eq.f32.partialorder %v1611, %v1613
      %v1615 = vsel %vm1614, %v1610, inf
      %1616 = vmin.xlane.f32.xlu0 %v1615
      %v1617 = vpop.xlane.xlu0 %1616
      %v1618 = vcvt.f32.s32 %v1617
      %v1619 = vcvt.f32.s32 %v1613
      %v1620 = vshll.u32 %v1619, 16
      %v1621 = vadd.s32 %v1620, %v1618
      %v1622 = vsel %vm754, %v1396, 2147483647
      %v1623 = vand.u32 %v1622, 65535
      %v1624 = vshra.s32 %v1622, 16
      %v1625 = vcvt.s32.f32 %v1623
      %v1626 = vcvt.s32.f32 %v1624
      %1627 = vmin.xlane.f32.xlu0 %v1626
      %v1628 = vpop.xlane.xlu0 %1627
      %vm1629 = vcmp.eq.f32.partialorder %v1626, %v1628
      %v1630 = vsel %vm1629, %v1625, inf
      %1631 = vmin.xlane.f32.xlu0 %v1630
      %v1632 = vpop.xlane.xlu0 %1631
      %v1633 = vcvt.f32.s32 %v1632
      %v1634 = vcvt.f32.s32 %v1628
      %v1635 = vshll.u32 %v1634, 16
      %v1636 = vadd.s32 %v1635, %v1633
      %vm1637 = vcmp.eq.s32.totalorder %v1364, %v1411
      %vm1638 = vcmp.eq.s32.totalorder %v1364, %v1426
      %vm1639 = vcmp.eq.s32.totalorder %v1364, %v1441
      %vm1640 = vcmp.eq.s32.totalorder %v1364, %v1456
      %vm1641 = vcmp.eq.s32.totalorder %v1364, %v1471
      %vm1642 = vcmp.eq.s32.totalorder %v1364, %v1486
      %vm1643 = vcmp.eq.s32.totalorder %v1364, %v1501
      %vm1644 = vcmp.eq.s32.totalorder %v1364, %v1516
      %vm1645 = vcmp.eq.s32.totalorder %v1364, %v1531
      %vm1646 = vcmp.eq.s32.totalorder %v1364, %v1546
      %vm1647 = vcmp.eq.s32.totalorder %v1364, %v1561
      %vm1648 = vcmp.eq.s32.totalorder %v1364, %v1576
      %vm1649 = vcmp.eq.s32.totalorder %v1364, %v1591
      %vm1650 = vcmp.eq.s32.totalorder %v1364, %v1606
      %vm1651 = vcmp.eq.s32.totalorder %v1364, %v1621
      %vm1652 = vcmp.eq.s32.totalorder %v1364, %v1636
      %v1653 = vsel %vm1637, %v931, 0.0
      %v1654 = vsel %vm1638, %v932, 0.0
      %v1655 = vsel %vm1639, %v933, 0.0
      %v1656 = vsel %vm1640, %v934, 0.0
      %v1657 = vsel %vm1641, %v935, 0.0
      %v1658 = vsel %vm1642, %v936, 0.0
      %v1659 = vsel %vm1643, %v937, 0.0
      %v1660 = vsel %vm1644, %v938, 0.0
      %v1661 = vsel %vm1645, %v939, 0.0
      %v1662 = vsel %vm1646, %v940, 0.0
      %v1663 = vsel %vm1647, %v941, 0.0
      %v1664 = vsel %vm1648, %v942, 0.0
      %v1665 = vsel %vm1649, %v943, 0.0
      %v1666 = vsel %vm1650, %v944, 0.0
      %v1667 = vsel %vm1651, %v945, 0.0
      %v1668 = vsel %vm1652, %v946, 0.0
      %v1669 = vsel %vm754, %v1653, 0.0
      %1670 = vadd.xlane.f32.xlu0 %v1669
      %v1671 = vpop.xlane.xlu0 %1670
      %v1672 = vsel %vm754, %v1654, 0.0
      %1673 = vadd.xlane.f32.xlu0 %v1672
      %v1674 = vpop.xlane.xlu0 %1673
      %v1675 = vsel %vm754, %v1655, 0.0
      %1676 = vadd.xlane.f32.xlu0 %v1675
      %v1677 = vpop.xlane.xlu0 %1676
      %v1678 = vsel %vm754, %v1656, 0.0
      %1679 = vadd.xlane.f32.xlu0 %v1678
      %v1680 = vpop.xlane.xlu0 %1679
      %v1681 = vsel %vm754, %v1657, 0.0
      %1682 = vadd.xlane.f32.xlu0 %v1681
      %v1683 = vpop.xlane.xlu0 %1682
      %v1684 = vsel %vm754, %v1658, 0.0
      %1685 = vadd.xlane.f32.xlu0 %v1684
      %v1686 = vpop.xlane.xlu0 %1685
      %v1687 = vsel %vm754, %v1659, 0.0
      %1688 = vadd.xlane.f32.xlu0 %v1687
      %v1689 = vpop.xlane.xlu0 %1688
      %v1690 = vsel %vm754, %v1660, 0.0
      %1691 = vadd.xlane.f32.xlu0 %v1690
      %v1692 = vpop.xlane.xlu0 %1691
      %v1693 = vsel %vm754, %v1661, 0.0
      %1694 = vadd.xlane.f32.xlu0 %v1693
      %v1695 = vpop.xlane.xlu0 %1694
      %v1696 = vsel %vm754, %v1662, 0.0
      %1697 = vadd.xlane.f32.xlu0 %v1696
      %v1698 = vpop.xlane.xlu0 %1697
      %v1699 = vsel %vm754, %v1663, 0.0
      %1700 = vadd.xlane.f32.xlu0 %v1699
      %v1701 = vpop.xlane.xlu0 %1700
      %v1702 = vsel %vm754, %v1664, 0.0
      %1703 = vadd.xlane.f32.xlu0 %v1702
      %v1704 = vpop.xlane.xlu0 %1703
      %v1705 = vsel %vm754, %v1665, 0.0
      %1706 = vadd.xlane.f32.xlu0 %v1705
      %v1707 = vpop.xlane.xlu0 %1706
      %v1708 = vsel %vm754, %v1666, 0.0
      %1709 = vadd.xlane.f32.xlu0 %v1708
      %v1710 = vpop.xlane.xlu0 %1709
      %v1711 = vsel %vm754, %v1667, 0.0
      %1712 = vadd.xlane.f32.xlu0 %v1711
      %v1713 = vpop.xlane.xlu0 %1712
      %v1714 = vsel %vm754, %v1668, 0.0
      %1715 = vadd.xlane.f32.xlu0 %v1714
      %v1716 = vpop.xlane.xlu0 %1715
      %v1717 = vmin.f32 %v1671, 0.0
      %v1718 = vmin.f32 %v1674, 0.0
      %v1719 = vmin.f32 %v1677, 0.0
      %v1720 = vmin.f32 %v1680, 0.0
      %v1721 = vmin.f32 %v1683, 0.0
      %v1722 = vmin.f32 %v1686, 0.0
      %v1723 = vmin.f32 %v1689, 0.0
      %v1724 = vmin.f32 %v1692, 0.0
      %v1725 = vmin.f32 %v1695, 0.0
      %v1726 = vmin.f32 %v1698, 0.0
      %v1727 = vmin.f32 %v1701, 0.0
      %v1728 = vmin.f32 %v1704, 0.0
      %v1729 = vmin.f32 %v1707, 0.0
      %v1730 = vmin.f32 %v1710, 0.0
      %v1731 = vmin.f32 %v1713, 0.0
      %v1732 = vmin.f32 %v1716, 0.0
      %v1733 = vcvt.s32.f32 %v1411
      %v1734 = vcvt.s32.f32 %v1426
      %v1735 = vcvt.s32.f32 %v1441
      %v1736 = vcvt.s32.f32 %v1456
      %v1737 = vcvt.s32.f32 %v1471
      %v1738 = vcvt.s32.f32 %v1486
      %v1739 = vcvt.s32.f32 %v1501
      %v1740 = vcvt.s32.f32 %v1516
      %v1741 = vcvt.s32.f32 %v1531
      %v1742 = vcvt.s32.f32 %v1546
      %v1743 = vcvt.s32.f32 %v1561
      %v1744 = vcvt.s32.f32 %v1576
      %v1745 = vcvt.s32.f32 %v1591
      %v1746 = vcvt.s32.f32 %v1606
      %v1747 = vcvt.s32.f32 %v1621
      %v1748 = vcvt.s32.f32 %v1636
      %vm1749 = vcmask 7168
      %v1750 = vsel %vm1749, %v1733, %v1717
      %v1751 = vsel %vm1749, %v1734, %v1718
      %v1752 = vsel %vm1749, %v1735, %v1719
      %v1753 = vsel %vm1749, %v1736, %v1720
      %v1754 = vsel %vm1749, %v1737, %v1721
      %v1755 = vsel %vm1749, %v1738, %v1722
      %v1756 = vsel %vm1749, %v1739, %v1723
      %v1757 = vsel %vm1749, %v1740, %v1724
      %v1758 = vsel %vm1749, %v1741, %v1725
      %v1759 = vsel %vm1749, %v1742, %v1726
      %v1760 = vsel %vm1749, %v1743, %v1727
      %v1761 = vsel %vm1749, %v1744, %v1728
      %v1762 = vsel %vm1749, %v1745, %v1729
      %v1763 = vsel %vm1749, %v1746, %v1730
      %v1764 = vsel %vm1749, %v1747, %v1731
      %v1765 = vsel %vm1749, %v1748, %v1732
      %vm1766 = vcmask 15360
      %v1767 = vsel %vm1766, %v1750, %v1267
      %v1768 = vsel %vm1766, %v1751, %v1268
      %v1769 = vsel %vm1766, %v1752, %v1269
      %v1770 = vsel %vm1766, %v1753, %v1270
      %v1771 = vsel %vm1766, %v1754, %v1271
      %v1772 = vsel %vm1766, %v1755, %v1272
      %v1773 = vsel %vm1766, %v1756, %v1273
      %v1774 = vsel %vm1766, %v1757, %v1274
      %v1775 = vsel %vm1766, %v1758, %v1275
      %v1776 = vsel %vm1766, %v1759, %v1276
      %v1777 = vsel %vm1766, %v1760, %v1277
      %v1778 = vsel %vm1766, %v1761, %v1278
      %v1779 = vsel %vm1766, %v1762, %v1279
      %v1780 = vsel %vm1766, %v1763, %v1280
      %v1781 = vsel %vm1766, %v1764, %v1281
      %v1782 = vsel %vm1766, %v1765, %v1282
      %1783 = vxpose.xlu0.b32.start [1/16] %v1767, 128
      %1784 = vxpose.xlu0.b32.cont [2/16] %v1768, 128
      %1785 = vxpose.xlu0.b32.cont [3/16] %v1769, 128
      %1786 = vxpose.xlu0.b32.cont [4/16] %v1770, 128
      %1787 = vxpose.xlu0.b32.cont [5/16] %v1771, 128
      %1788 = vxpose.xlu0.b32.cont [6/16] %v1772, 128
      %1789 = vxpose.xlu0.b32.cont [7/16] %v1773, 128
      %1790 = vxpose.xlu0.b32.cont [8/16] %v1774, 128
      %1791 = vxpose.xlu0.b32.cont [9/16] %v1775, 128
      %1792 = vxpose.xlu0.b32.cont [10/16] %v1776, 128
      %1793 = vxpose.xlu0.b32.cont [11/16] %v1777, 128
      %1794 = vxpose.xlu0.b32.cont [12/16] %v1778, 128
      %1795 = vxpose.xlu0.b32.cont [13/16] %v1779, 128
      %1796 = vxpose.xlu0.b32.cont [14/16] %v1780, 128
      %1797 = vxpose.xlu0.b32.cont [15/16] %v1781, 128
      %1798 = vxpose.xlu0.b32.end [16/16] %v1782, 128
      %v1799 = vpop.trf.xlu0
      %v1800 = vpop.trf.xlu0
      %v1801 = vpop.trf.xlu0
      %v1802 = vpop.trf.xlu0
      %v1803 = vpop.trf.xlu0
      %v1804 = vpop.trf.xlu0
      %v1805 = vpop.trf.xlu0
      %v1806 = vpop.trf.xlu0
      %v1807 = vpop.trf.xlu0
      %v1808 = vpop.trf.xlu0
      %v1809 = vpop.trf.xlu0
      %v1810 = vpop.trf.xlu0
      %v1811 = vpop.trf.xlu0
      %v1812 = vpop.trf.xlu0
      %v1813 = vpop.trf.xlu0
      %v1814 = vpop.trf.xlu0
      %1815 = vst [vmem:[%s327] sm:$0x7] %v1799
      %p1816 = scmp.lt.s32.totalorder %s19, 1
      %s1817 = scalar_select %p1816, %s19, 1
      %s1818 = smul.addr %s1817, 4
      %s1819 = scalar_lea.vmem %s8, %s1818
      // Predicated region
      $region53: #{policy_net_forward.1} parent=51 // pred_check
        %p1820 = pneg %p215
      $region54: #{policy_net_forward.1} parent=51 // pred_check_branch
        %1822 = sbr.rel (%p1820) target = $region56
      $region55: #{policy_net_forward.1} parent=51 // pred_region
        _
      $region56: #{policy_net_forward.1} parent=51 // pred_fallthru
        _
    $region52: #{policy_net_forward.1} parent=5 // pred_fallthru
      _
    %p1823 = scmp.le.s32.totalorder 2, %s14
    // Predicated region
    $region57: #{policy_net_forward.1} parent=5 // pred_check
      %p1824 = pneg %p1823
    $region58: #{policy_net_forward.1} parent=5 // pred_check_branch
      %1826 = sbr.rel (%p1824) target = $region60
    $region59: #{policy_net_forward.1} parent=5 // pred_region
      %s1827 = ssub.s32 %s14, 2
      // Predicated region
      $region61: #{policy_net_forward.1} parent=59 // pred_check
        %p1828 = pneg %p221
      $region62: #{policy_net_forward.1} parent=59 // pred_check_branch
        %1830 = sbr.rel (%p1828) target = $region64
      $region63: #{policy_net_forward.1} parent=59 // pred_region
        %p1831 = scmp.lt.s32.totalorder %s20, 1
        %s1832 = scalar_select %p1831, %s20, 1
        %s1833 = smul.addr %s1832, 4
        %s1834 = scalar_lea.vmem %s8, %s1833
      $region64: #{policy_net_forward.1} parent=59 // pred_fallthru
        _
    $region60: #{policy_net_forward.1} parent=5 // pred_fallthru
      _
  $region6: #{policy_net_forward.1} parent=0 // loop_footer
    %s18 = sadd.s32 1, %s14
  $region7: #{policy_net_forward.1} parent=0 // loop_footer_branch
    %13 = sbr.rel target = $region3
  $region8: #{policy_net_forward.1} parent=0 // loop_exit
    _

</llo_original>
